<compile_context>
chip_gen: v6e
topology: v6e:2x2x1
jax: 0.10.0
libtpu: 0.0.40
codegen_flags: <defaults>
</compile_context>

<pallas_src>
import functools

import jax
import jax.numpy as jnp
from jax.experimental import pallas as pl
from jax.experimental.pallas import tpu as pltpu


# ---------------------------------------------------------------------------
# Kernel 1: LocalModule (folded BN + pointwise convs + 3x3 depthwise) + residual
# ---------------------------------------------------------------------------
def _local_kernel(x_ref, s0_ref, b0_ref, w0_ref, dw_ref, s1_ref, b1_ref, w1_ref,
                  o_ref, pad_ref):
    _, H, W, C = x_ref.shape
    f32 = jnp.float32
    x = x_ref[0].astype(f32)                                   # (H, W, C)

    # BatchNorm0 (folded scale/shift) + pointwise conv 0 (MXU matmul over channels).
    y = x * s0_ref[0] + b0_ref[0]
    y = jnp.dot(y.reshape(H * W, C), w0_ref[...],
                preferred_element_type=f32).reshape(H, W, C)

    # 3x3 depthwise conv, padding=1, via a zero-padded VMEM scratch.
    # The image is stored at sublane-aligned column offset 8; the 9 halo reads at
    # column offsets 7..9 pick up zeros on the borders.
    pad_ref[...] = jnp.zeros(pad_ref.shape, f32)
    pad_ref[pl.ds(1, H), pl.ds(8, W), :] = y
    acc = jnp.zeros((H, W, C), f32)
    for dy in range(3):
        for dx in range(3):
            tap = pad_ref[pl.ds(dy, H), pl.ds(7 + dx, W), :]
            acc = acc + tap * dw_ref[dy * 3 + dx]

    # BatchNorm1 (folded) + pointwise conv 1, then residual with the block input.
    z = acc * s1_ref[0] + b1_ref[0]
    z = jnp.dot(z.reshape(H * W, C), w1_ref[...],
                preferred_element_type=f32).reshape(H, W, C)
    o_ref[0] = (z + x).astype(o_ref.dtype)


def _local_module_call(x_img, s0, b0, w0t, dwf, s1, b1, w1t):
    B, H, W, C = x_img.shape
    const2 = lambda b: (0, 0)
    return pl.pallas_call(
        _local_kernel,
        out_shape=jax.ShapeDtypeStruct((B, H, W, C), x_img.dtype),
        grid_spec=pltpu.PrefetchScalarGridSpec(
            num_scalar_prefetch=0,
            grid=(B,),
            in_specs=[
                pl.BlockSpec((1, H, W, C), lambda b: (b, 0, 0, 0)),
                pl.BlockSpec((1, C), const2),
                pl.BlockSpec((1, C), const2),
                pl.BlockSpec((C, C), const2),
                pl.BlockSpec((9, C), const2),
                pl.BlockSpec((1, C), const2),
                pl.BlockSpec((1, C), const2),
                pl.BlockSpec((C, C), const2),
            ],
            out_specs=pl.BlockSpec((1, H, W, C), lambda b: (b, 0, 0, 0)),
            scratch_shapes=[pltpu.VMEM((H + 2, W + 16, C), jnp.float32)],
        ),
        compiler_params=pltpu.CompilerParams(dimension_semantics=("parallel",)),
    )(x_img, s0, b0, w0t, dwf, s1, b1, w1t)


# ---------------------------------------------------------------------------
# Kernel 2: window attention (qkv + linear attention + proj + residual).
# window_partition / window_reverse are fused into the BlockSpec index maps.
# ---------------------------------------------------------------------------
def _window_attn_kernel(loc_ref, wq_ref, bq_ref, wk_ref, bk_ref, wv_ref, bv_ref,
                        wp_ref, bp_ref, hmask_ref, o_ref, *, scale):
    _, wh, ww, C = loc_ref.shape
    N = wh * ww
    f32 = jnp.float32
    lw = loc_ref[0].astype(f32).reshape(N, C)                  # (N, C) one window

    q = jnp.dot(lw, wq_ref[...], preferred_element_type=f32) + bq_ref[...]
    k = jnp.dot(lw, wk_ref[...], preferred_element_type=f32) + bk_ref[...]
    v = jnp.dot(lw, wv_ref[...], preferred_element_type=f32) + bv_ref[...]

    # softmax over the token axis (PyTorch: nn.Softmax(dim=-2) on k), per (head, dim) column.
    k = k - jnp.max(k, axis=0, keepdims=True)
    k = jnp.exp(k)
    k = k / jnp.sum(k, axis=0, keepdims=True)

    # K^T @ V for all heads at once: the per-head (hd, hd) results are the diagonal blocks
    # of the (C, C) product.  Masking the off-diagonal head blocks makes the following
    # full-width matmul exactly reproduce the per-head batched matmuls.
    kv = jax.lax.dot_general(k, v, (((0,), (0,)), ((), ())),
                             preferred_element_type=f32)       # (C, C)
    kv = kv * hmask_ref[...]
    out = jnp.dot(q * scale, kv, preferred_element_type=f32)   # (N, C)

    out = jnp.dot(out, wp_ref[...], preferred_element_type=f32) + bp_ref[...]
    o_ref[0] = (out + lw).reshape(wh, ww, C).astype(o_ref.dtype)


def _window_attention_call(local, wq, bq, wk, bk, wv, bv, wp, bp, hmask,
                           *, window_size, scale):
    B, H, W, C = local.shape
    ws = window_size
    kern = functools.partial(_window_attn_kernel, scale=scale)
    const2 = lambda b, i, j: (0, 0)
    return pl.pallas_call(
        kern,
        out_shape=jax.ShapeDtypeStruct((B, H, W, C), local.dtype),
        grid_spec=pltpu.PrefetchScalarGridSpec(
            num_scalar_prefetch=0,
            grid=(B, H // ws, W // ws),
            in_specs=[
                pl.BlockSpec((1, ws, ws, C), lambda b, i, j: (b, i, j, 0)),
                pl.BlockSpec((C, C), const2), pl.BlockSpec((1, C), const2),
                pl.BlockSpec((C, C), const2), pl.BlockSpec((1, C), const2),
                pl.BlockSpec((C, C), const2), pl.BlockSpec((1, C), const2),
                pl.BlockSpec((C, C), const2), pl.BlockSpec((1, C), const2),
                pl.BlockSpec((C, C), const2),
            ],
            out_specs=pl.BlockSpec((1, ws, ws, C), lambda b, i, j: (b, i, j, 0)),
        ),
        compiler_params=pltpu.CompilerParams(
            dimension_semantics=("parallel", "parallel", "parallel")),
    )(local, wq, bq, wk, bk, wv, bv, wp, bp, hmask)


# ---------------------------------------------------------------------------
# Kernel 3: token-tiled MLP (fc1 -> GELU -> fc2) + residual
# ---------------------------------------------------------------------------
def _gelu_tanh(x):
    # TODO(synk): PyTorch nn.GELU() defaults to the exact erf formulation; the tanh
    # approximation is used here (and in the reference) for guaranteed Mosaic/EUP lowering.
    c = 0.7978845608028654  # sqrt(2 / pi)
    return 0.5 * x * (1.0 + jnp.tanh(c * (x + 0.044715 * x * x * x)))


def _mlp_kernel(x_ref, w1_ref, b1_ref, w2_ref, b2_ref, o_ref):
    f32 = jnp.float32
    x = x_ref[0].astype(f32)                                   # (T, C)
    h = jnp.dot(x, w1_ref[...], preferred_element_type=f32) + b1_ref[...]
    h = _gelu_tanh(h)
    y = jnp.dot(h, w2_ref[...], preferred_element_type=f32) + b2_ref[...]
    o_ref[0] = (x + y).astype(o_ref.dtype)


def _mlp_residual_call(tokens, w1t, b1, w2t, b2, *, token_tile=256):
    B, L, C = tokens.shape
    Hd = w1t.shape[1]
    T = min(L, token_tile)
    const2 = lambda b, t: (0, 0)
    return pl.pallas_call(
        _mlp_kernel,
        out_shape=jax.ShapeDtypeStruct((B, L, C), tokens.dtype),
        grid_spec=pltpu.PrefetchScalarGridSpec(
            num_scalar_prefetch=0,
            grid=(B, pl.cdiv(L, T)),
            in_specs=[
                pl.BlockSpec((1, T, C), lambda b, t: (b, t, 0)),
                pl.BlockSpec((C, Hd), const2),
                pl.BlockSpec((1, Hd), const2),
                pl.BlockSpec((Hd, C), const2),
                pl.BlockSpec((1, C), const2),
            ],
            out_specs=pl.BlockSpec((1, T, C), lambda b, t: (b, t, 0)),
        ),
        compiler_params=pltpu.CompilerParams(
            dimension_semantics=("parallel", "parallel")),
    )(tokens, w1t, b1, w2t, b2)


# ---------------------------------------------------------------------------
# Full SwinTransformerBlock forward (matches the PyTorch module semantics)
# ---------------------------------------------------------------------------
def swin_transformer_block(x, x_size, params, *, num_heads, window_size=8,
                           shift_size=0, eps=1e-5):
    H, W = x_size
    B, L, C = x.shape
    assert L == H * W
    assert H % window_size == 0 and W % window_size == 0
    assert W % 8 == 0 and window_size % 8 == 0   # keep in-kernel reshapes layout-free
    assert C % num_heads == 0
    head_dim = C // num_heads
    scale = float(head_dim) ** -0.5
    f32 = jnp.float32

    # Fold inference-mode BatchNorm2d into per-channel scale/shift.
    inv0 = 1.0 / jnp.sqrt(params["bn0_v"].astype(f32) + eps)
    s0 = (params["bn0_g"] * inv0).reshape(1, C).astype(f32)
    b0 = (params["bn0_b"] - params["bn0_m"] * params["bn0_g"] * inv0).reshape(1, C).astype(f32)
    inv1 = 1.0 / jnp.sqrt(params["bn1_v"].astype(f32) + eps)
    s1 = (params["bn1_g"] * inv1).reshape(1, C).astype(f32)
    b1 = (params["bn1_b"] - params["bn1_m"] * params["bn1_g"] * inv1).reshape(1, C).astype(f32)

    # Conv / Linear weights pre-transposed to (in, out) so kernels do plain x @ W.
    w0t = params["w_pw0"].T.astype(f32)
    w1t = params["w_pw1"].T.astype(f32)
    dwf = jnp.transpose(params["w_dw"], (1, 2, 0)).reshape(9, C).astype(f32)

    wq = params["w_qkv"][0 * C:1 * C].T.astype(f32)
    wk = params["w_qkv"][1 * C:2 * C].T.astype(f32)
    wv = params["w_qkv"][2 * C:3 * C].T.astype(f32)
    bq = params["b_qkv"][0 * C:1 * C].reshape(1, C).astype(f32)
    bk = params["b_qkv"][1 * C:2 * C].reshape(1, C).astype(f32)
    bv = params["b_qkv"][2 * C:3 * C].reshape(1, C).astype(f32)
    wp = params["w_proj"].T.astype(f32)
    bp = params["b_proj"].reshape(1, C).astype(f32)

    # Block-diagonal head mask for the fused all-heads (C, C) K^T V matmul.
    hidx = jnp.arange(C) // head_dim
    hmask = (hidx[:, None] == hidx[None, :]).astype(f32)

    wf1 = params["w_fc1"].T.astype(f32)                        # (C, Hd)
    bf1 = params["b_fc1"].reshape(1, -1).astype(f32)
    wf2 = params["w_fc2"].T.astype(f32)                        # (Hd, C)
    bf2 = params["b_fc2"].reshape(1, C).astype(f32)

    x_img = x.reshape(B, H, W, C)
    if shift_size > 0:
        x_img = jnp.roll(x_img, (-shift_size, -shift_size), axis=(1, 2))

    local = _local_module_call(x_img, s0, b0, w0t, dwf, s1, b1, w1t)
    attn = _window_attention_call(local, wq, bq, wk, bk, wv, bv, wp, bp, hmask,
                                  window_size=window_size, scale=scale)
    if shift_size > 0:
        attn = jnp.roll(attn, (shift_size, shift_size), axis=(1, 2))
    tokens = attn.reshape(B, L, C)
    return _mlp_residual_call(tokens, wf1, bf1, wf2, bf2)


# ---------------------------------------------------------------------------
# Pure-JAX reference mirroring the PyTorch forward exactly (inference-mode BN)
# ---------------------------------------------------------------------------
def reference_forward(x, x_size, p, *, num_heads, window_size=8, shift_size=0, eps=1e-5):
    H, W = x_size
    B, L, C = x.shape
    hd = C // num_heads
    scale = float(hd) ** -0.5
    ws = window_size
    PREC = jax.lax.Precision.HIGHEST

    def bn(v, g, b, m, var):
        return (v - m) / jnp.sqrt(var + eps) * g + b

    xi = x.reshape(B, H, W, C)
    if shift_size > 0:
        xi = jnp.roll(xi, (-shift_size, -shift_size), axis=(1, 2))

    # LocalModule (NHWC)
    y = bn(xi, p["bn0_g"], p["bn0_b"], p["bn0_m"], p["bn0_v"])
    y = jnp.einsum("bhwc,oc->bhwo", y, p["w_pw0"], precision=PREC)
    yp = jnp.pad(y, ((0, 0), (1, 1), (1, 1), (0, 0)))
    z = jnp.zeros_like(y)
    for dy in range(3):
        for dx in range(3):
            z = z + yp[:, dy:dy + H, dx:dx + W, :] * p["w_dw"][:, dy, dx]
    z = bn(z, p["bn1_g"], p["bn1_b"], p["bn1_m"], p["bn1_v"])
    z = jnp.einsum("bhwc,oc->bhwo", z, p["w_pw1"], precision=PREC)
    local = z + xi

    # Window attention
    qkv = jnp.einsum("bhwc,oc->bhwo", local, p["w_qkv"], precision=PREC) + p["b_qkv"]
    nH, nW = H // ws, W // ws
    qkv = qkv.reshape(B, nH, ws, nW, ws, 3 * C).transpose(0, 1, 3, 2, 4, 5)
    qkv = qkv.reshape(-1, ws * ws, 3 * C)
    B_, N = qkv.shape[0], ws * ws
    qkv = qkv.reshape(B_, N, 3, num_heads, hd).transpose(2, 0, 3, 1, 4)
    q, k, v = qkv[0], qkv[1], qkv[2]                            # (B_, nh, N, hd)
    k = jax.nn.softmax(k, axis=-2)
    q = q * scale
    attn = jnp.einsum("bhnd,bhne->bhde", k, v, precision=PREC)
    o = jnp.einsum("bhnd,bhde->bhne", q, attn, precision=PREC)
    o = o.transpose(0, 2, 1, 3).reshape(B_, N, C)
    o = jnp.einsum("bnc,oc->bno", o, p["w_proj"], precision=PREC) + p["b_proj"]
    o = o.reshape(B, nH, nW, ws, ws, C).transpose(0, 1, 3, 2, 4, 5).reshape(B, H, W, C)
    attn_out = o + local
    if shift_size > 0:
        attn_out = jnp.roll(attn_out, (shift_size, shift_size), axis=(1, 2))
    xt = attn_out.reshape(B, L, C)

    # MLP + residual
    h = jnp.einsum("blc,oc->blo", xt, p["w_fc1"], precision=PREC) + p["b_fc1"]
    h = _gelu_tanh(h)
    h = jnp.einsum("blo,co->blc", h, p["w_fc2"], precision=PREC) + p["b_fc2"]
    return xt + h


if __name__ == "__main__":
    B, C, H, W = 2, 32, 16, 16
    num_heads = 4
    window_size = 8
    shift_size = 0              # module default
    mlp_hidden = int(C * 4.0)
    L = H * W

    key = jax.random.PRNGKey(0)
    ks = jax.random.split(key, 20)

    def nrm(k, shape, s=0.1):
        return s * jax.random.normal(k, shape, dtype=jnp.float32)

    params = {
        "bn0_g": 1.0 + nrm(ks[0], (C,)),
        "bn0_b": nrm(ks[1], (C,)),
        "bn0_m": nrm(ks[2], (C,)),
        "bn0_v": jax.random.uniform(ks[3], (C,), minval=0.5, maxval=1.5),
        "w_pw0": nrm(ks[4], (C, C)),
        "w_dw": nrm(ks[5], (C, 3, 3)),
        "bn1_g": 1.0 + nrm(ks[6], (C,)),
        "bn1_b": nrm(ks[7], (C,)),
        "bn1_m": nrm(ks[8], (C,)),
        "bn1_v": jax.random.uniform(ks[9], (C,), minval=0.5, maxval=1.5),
        "w_pw1": nrm(ks[10], (C, C)),
        "w_qkv": nrm(ks[11], (3 * C, C)),
        "b_qkv": nrm(ks[12], (3 * C,)),
        "w_proj": nrm(ks[13], (C, C)),
        "b_proj": nrm(ks[14], (C,)),
        "w_fc1": nrm(ks[15], (mlp_hidden, C)),
        "b_fc1": nrm(ks[16], (mlp_hidden,)),
        "w_fc2": nrm(ks[17], (C, mlp_hidden)),
        "b_fc2": nrm(ks[18], (C,)),
    }
    x = jax.random.normal(ks[19], (B, L, C), dtype=jnp.float32)

    out = swin_transformer_block(x, (H, W), params, num_heads=num_heads,
                                 window_size=window_size, shift_size=shift_size)
    out = jax.block_until_ready(out)

    ref = reference_forward(x, (H, W), params, num_heads=num_heads,
                            window_size=window_size, shift_size=shift_size)
    ref = jax.block_until_ready(ref)

    assert out.shape == (B, L, C), out.shape
    assert out.dtype == x.dtype
    max_err = float(jnp.max(jnp.abs(out - ref)))
    assert jnp.allclose(out, ref, rtol=1e-2, atol=1e-2), f"max abs err={max_err}"
    print("KERNEL_OK")
</pallas_src>

<mosaic_0001>
module attributes {stable_mosaic.version = 11 : i64} {
  func.func @_local_kernel(%arg0: i32, %arg1: memref<1x16x16x32xf32, #tpu.memory_space<vmem>>, %arg2: memref<1x32xf32, #tpu.memory_space<vmem>>, %arg3: memref<1x32xf32, #tpu.memory_space<vmem>>, %arg4: memref<32x32xf32, #tpu.memory_space<vmem>>, %arg5: memref<9x32xf32, #tpu.memory_space<vmem>>, %arg6: memref<1x32xf32, #tpu.memory_space<vmem>>, %arg7: memref<1x32xf32, #tpu.memory_space<vmem>>, %arg8: memref<32x32xf32, #tpu.memory_space<vmem>>, %arg9: memref<1x16x16x32xf32, #tpu.memory_space<vmem>>, %arg10: memref<18x32x32xf32, #tpu.memory_space<vmem>>) attributes {dimension_semantics = [#tpu.dimension_semantics<parallel>], iteration_bounds = array<i64: 2>, scalar_prefetch = 0 : i64, scratch_operands = 1 : i64, tpu.core_type = #tpu.core_type<tc>, window_params = [{transform_indices = @transform_0, window_bounds = array<i64: 1, 16, 16, 32>}, {pipeline_mode = #tpu.pipeline_mode<synchronous>, transform_indices = @transform_1, window_bounds = array<i64: 1, 32>}, {pipeline_mode = #tpu.pipeline_mode<synchronous>, transform_indices = @transform_2, window_bounds = array<i64: 1, 32>}, {pipeline_mode = #tpu.pipeline_mode<synchronous>, transform_indices = @transform_3, window_bounds = array<i64: 32, 32>}, {pipeline_mode = #tpu.pipeline_mode<synchronous>, transform_indices = @transform_4, window_bounds = array<i64: 9, 32>}, {pipeline_mode = #tpu.pipeline_mode<synchronous>, transform_indices = @transform_5, window_bounds = array<i64: 1, 32>}, {pipeline_mode = #tpu.pipeline_mode<synchronous>, transform_indices = @transform_6, window_bounds = array<i64: 1, 32>}, {pipeline_mode = #tpu.pipeline_mode<synchronous>, transform_indices = @transform_7, window_bounds = array<i64: 32, 32>}, {transform_indices = @transform_8, window_bounds = array<i64: 1, 16, 16, 32>}]} {
    %c0 = arith.constant 0 : index
    %c0_0 = arith.constant 0 : index
    %c0_1 = arith.constant 0 : index
    %c0_2 = arith.constant 0 : index
    %0 = vector.load %arg1[%c0, %c0_0, %c0_1, %c0_2] : memref<1x16x16x32xf32, #tpu.memory_space<vmem>>, vector<1x16x16x32xf32>
    %1 = vector.shape_cast %0 : vector<1x16x16x32xf32> to vector<16x16x32xf32>
    %c0_3 = arith.constant 0 : index
    %c0_4 = arith.constant 0 : index
    %2 = vector.load %arg2[%c0_3, %c0_4] : memref<1x32xf32, #tpu.memory_space<vmem>>, vector<1x32xf32>
    %3 = vector.shape_cast %2 : vector<1x32xf32> to vector<32xf32>
    %4 = vector.shape_cast %3 : vector<32xf32> to vector<1x1x32xf32>
    %5 = vector.broadcast %4 : vector<1x1x32xf32> to vector<16x16x32xf32>
    %6 = arith.mulf %1, %5 : vector<16x16x32xf32>
    %c0_5 = arith.constant 0 : index
    %c0_6 = arith.constant 0 : index
    %7 = vector.load %arg3[%c0_5, %c0_6] : memref<1x32xf32, #tpu.memory_space<vmem>>, vector<1x32xf32>
    %8 = vector.shape_cast %7 : vector<1x32xf32> to vector<32xf32>
    %9 = vector.shape_cast %8 : vector<32xf32> to vector<1x1x32xf32>
    %10 = vector.broadcast %9 : vector<1x1x32xf32> to vector<16x16x32xf32>
    %11 = arith.addf %6, %10 : vector<16x16x32xf32>
    %12 = vector.shape_cast %11 : vector<16x16x32xf32> to vector<256x32xf32>
    %c0_7 = arith.constant 0 : index
    %c0_8 = arith.constant 0 : index
    %13 = vector.load %arg4[%c0_7, %c0_8] : memref<32x32xf32, #tpu.memory_space<vmem>>, vector<32x32xf32>
    %cst = arith.constant dense<0.000000e+00> : vector<256x32xf32>
    %14 = tpu.matmul %12, %13, %cst {dimension_numbers = #tpu.dot_dimension_numbers<[1], [0], [0], [1], [0, 0, 1, 1], [], []>} : vector<256x32xf32>, vector<32x32xf32>, vector<256x32xf32> -> vector<256x32xf32>
    %15 = vector.shape_cast %14 : vector<256x32xf32> to vector<16x16x32xf32>
    %cst_9 = arith.constant 0.000000e+00 : f32
    %16 = vector.broadcast %cst_9 : f32 to vector<18x32x32xf32>
    %c0_10 = arith.constant 0 : index
    %c0_11 = arith.constant 0 : index
    %c0_12 = arith.constant 0 : index
    %17 = vector.load %arg10[%c0_10, %c0_11, %c0_12] : memref<18x32x32xf32, #tpu.memory_space<vmem>>, vector<18x32x32xf32>
    tpu.vector_store %arg10[%c0_10, %c0_11, %c0_12], %16 {strides = array<i32>} : memref<18x32x32xf32, #tpu.memory_space<vmem>>, vector<18x32x32xf32>,
    %c1 = arith.constant 1 : index
    %c8 = arith.constant 8 : index
    %c0_13 = arith.constant 0 : index
    %18 = vector.load %arg10[%c1, %c8, %c0_13] : memref<18x32x32xf32, #tpu.memory_space<vmem>>, vector<16x16x32xf32>
    tpu.vector_store %arg10[%c1, %c8, %c0_13], %15 {strides = array<i32>} : memref<18x32x32xf32, #tpu.memory_space<vmem>>, vector<16x16x32xf32>,
    %cst_14 = arith.constant 0.000000e+00 : f32
    %19 = vector.broadcast %cst_14 : f32 to vector<16x16x32xf32>
    %c0_15 = arith.constant 0 : index
    %c7 = arith.constant 7 : index
    %c0_16 = arith.constant 0 : index
    %20 = vector.load %arg10[%c0_15, %c7, %c0_16] : memref<18x32x32xf32, #tpu.memory_space<vmem>>, vector<16x16x32xf32>
    %c0_17 = arith.constant 0 : index
    %c0_18 = arith.constant 0 : index
    %21 = vector.load %arg5[%c0_17, %c0_18] : memref<9x32xf32, #tpu.memory_space<vmem>>, vector<1x32xf32>
    %22 = vector.shape_cast %21 : vector<1x32xf32> to vector<32xf32>
    %23 = vector.shape_cast %22 : vector<32xf32> to vector<1x1x32xf32>
    %24 = vector.broadcast %23 : vector<1x1x32xf32> to vector<16x16x32xf32>
    %25 = arith.mulf %20, %24 : vector<16x16x32xf32>
    %26 = arith.addf %19, %25 : vector<16x16x32xf32>
    %c0_19 = arith.constant 0 : index
    %c8_20 = arith.constant 8 : index
    %c0_21 = arith.constant 0 : index
    %27 = vector.load %arg10[%c0_19, %c8_20, %c0_21] : memref<18x32x32xf32, #tpu.memory_space<vmem>>, vector<16x16x32xf32>
    %c1_22 = arith.constant 1 : index
    %c0_23 = arith.constant 0 : index
    %28 = vector.load %arg5[%c1_22, %c0_23] : memref<9x32xf32, #tpu.memory_space<vmem>>, vector<1x32xf32>
    %29 = vector.shape_cast %28 : vector<1x32xf32> to vector<32xf32>
    %30 = vector.shape_cast %29 : vector<32xf32> to vector<1x1x32xf32>
    %31 = vector.broadcast %30 : vector<1x1x32xf32> to vector<16x16x32xf32>
    %32 = arith.mulf %27, %31 : vector<16x16x32xf32>
    %33 = arith.addf %26, %32 : vector<16x16x32xf32>
    %c0_24 = arith.constant 0 : index
    %c9 = arith.constant 9 : index
    %c0_25 = arith.constant 0 : index
    %34 = vector.load %arg10[%c0_24, %c9, %c0_25] : memref<18x32x32xf32, #tpu.memory_space<vmem>>, vector<16x16x32xf32>
    %c2 = arith.constant 2 : index
    %c0_26 = arith.constant 0 : index
    %35 = vector.load %arg5[%c2, %c0_26] : memref<9x32xf32, #tpu.memory_space<vmem>>, vector<1x32xf32>
    %36 = vector.shape_cast %35 : vector<1x32xf32> to vector<32xf32>
    %37 = vector.shape_cast %36 : vector<32xf32> to vector<1x1x32xf32>
    %38 = vector.broadcast %37 : vector<1x1x32xf32> to vector<16x16x32xf32>
    %39 = arith.mulf %34, %38 : vector<16x16x32xf32>
    %40 = arith.addf %33, %39 : vector<16x16x32xf32>
    %c1_27 = arith.constant 1 : index
    %c7_28 = arith.constant 7 : index
    %c0_29 = arith.constant 0 : index
    %41 = vector.load %arg10[%c1_27, %c7_28, %c0_29] : memref<18x32x32xf32, #tpu.memory_space<vmem>>, vector<16x16x32xf32>
    %c3 = arith.constant 3 : index
    %c0_30 = arith.constant 0 : index
    %42 = vector.load %arg5[%c3, %c0_30] : memref<9x32xf32, #tpu.memory_space<vmem>>, vector<1x32xf32>
    %43 = vector.shape_cast %42 : vector<1x32xf32> to vector<32xf32>
    %44 = vector.shape_cast %43 : vector<32xf32> to vector<1x1x32xf32>
    %45 = vector.broadcast %44 : vector<1x1x32xf32> to vector<16x16x32xf32>
    %46 = arith.mulf %41, %45 : vector<16x16x32xf32>
    %47 = arith.addf %40, %46 : vector<16x16x32xf32>
    %c1_31 = arith.constant 1 : index
    %c8_32 = arith.constant 8 : index
    %c0_33 = arith.constant 0 : index
    %48 = vector.load %arg10[%c1_31, %c8_32, %c0_33] : memref<18x32x32xf32, #tpu.memory_space<vmem>>, vector<16x16x32xf32>
    %c4 = arith.constant 4 : index
    %c0_34 = arith.constant 0 : index
    %49 = vector.load %arg5[%c4, %c0_34] : memref<9x32xf32, #tpu.memory_space<vmem>>, vector<1x32xf32>
    %50 = vector.shape_cast %49 : vector<1x32xf32> to vector<32xf32>
    %51 = vector.shape_cast %50 : vector<32xf32> to vector<1x1x32xf32>
    %52 = vector.broadcast %51 : vector<1x1x32xf32> to vector<16x16x32xf32>
    %53 = arith.mulf %48, %52 : vector<16x16x32xf32>
    %54 = arith.addf %47, %53 : vector<16x16x32xf32>
    %c1_35 = arith.constant 1 : index
    %c9_36 = arith.constant 9 : index
    %c0_37 = arith.constant 0 : index
    %55 = vector.load %arg10[%c1_35, %c9_36, %c0_37] : memref<18x32x32xf32, #tpu.memory_space<vmem>>, vector<16x16x32xf32>
    %c5 = arith.constant 5 : index
    %c0_38 = arith.constant 0 : index
    %56 = vector.load %arg5[%c5, %c0_38] : memref<9x32xf32, #tpu.memory_space<vmem>>, vector<1x32xf32>
    %57 = vector.shape_cast %56 : vector<1x32xf32> to vector<32xf32>
    %58 = vector.shape_cast %57 : vector<32xf32> to vector<1x1x32xf32>
    %59 = vector.broadcast %58 : vector<1x1x32xf32> to vector<16x16x32xf32>
    %60 = arith.mulf %55, %59 : vector<16x16x32xf32>
    %61 = arith.addf %54, %60 : vector<16x16x32xf32>
    %c2_39 = arith.constant 2 : index
    %c7_40 = arith.constant 7 : index
    %c0_41 = arith.constant 0 : index
    %62 = vector.load %arg10[%c2_39, %c7_40, %c0_41] : memref<18x32x32xf32, #tpu.memory_space<vmem>>, vector<16x16x32xf32>
    %c6 = arith.constant 6 : index
    %c0_42 = arith.constant 0 : index
    %63 = vector.load %arg5[%c6, %c0_42] : memref<9x32xf32, #tpu.memory_space<vmem>>, vector<1x32xf32>
    %64 = vector.shape_cast %63 : vector<1x32xf32> to vector<32xf32>
    %65 = vector.shape_cast %64 : vector<32xf32> to vector<1x1x32xf32>
    %66 = vector.broadcast %65 : vector<1x1x32xf32> to vector<16x16x32xf32>
    %67 = arith.mulf %62, %66 : vector<16x16x32xf32>
    %68 = arith.addf %61, %67 : vector<16x16x32xf32>
    %c2_43 = arith.constant 2 : index
    %c8_44 = arith.constant 8 : index
    %c0_45 = arith.constant 0 : index
    %69 = vector.load %arg10[%c2_43, %c8_44, %c0_45] : memref<18x32x32xf32, #tpu.memory_space<vmem>>, vector<16x16x32xf32>
    %c7_46 = arith.constant 7 : index
    %c0_47 = arith.constant 0 : index
    %70 = vector.load %arg5[%c7_46, %c0_47] : memref<9x32xf32, #tpu.memory_space<vmem>>, vector<1x32xf32>
    %71 = vector.shape_cast %70 : vector<1x32xf32> to vector<32xf32>
    %72 = vector.shape_cast %71 : vector<32xf32> to vector<1x1x32xf32>
    %73 = vector.broadcast %72 : vector<1x1x32xf32> to vector<16x16x32xf32>
    %74 = arith.mulf %69, %73 : vector<16x16x32xf32>
    %75 = arith.addf %68, %74 : vector<16x16x32xf32>
    %c2_48 = arith.constant 2 : index
    %c9_49 = arith.constant 9 : index
    %c0_50 = arith.constant 0 : index
    %76 = vector.load %arg10[%c2_48, %c9_49, %c0_50] : memref<18x32x32xf32, #tpu.memory_space<vmem>>, vector<16x16x32xf32>
    %c8_51 = arith.constant 8 : index
    %c0_52 = arith.constant 0 : index
    %77 = vector.load %arg5[%c8_51, %c0_52] : memref<9x32xf32, #tpu.memory_space<vmem>>, vector<1x32xf32>
    %78 = vector.shape_cast %77 : vector<1x32xf32> to vector<32xf32>
    %79 = vector.shape_cast %78 : vector<32xf32> to vector<1x1x32xf32>
    %80 = vector.broadcast %79 : vector<1x1x32xf32> to vector<16x16x32xf32>
    %81 = arith.mulf %76, %80 : vector<16x16x32xf32>
    %82 = arith.addf %75, %81 : vector<16x16x32xf32>
    %c0_53 = arith.constant 0 : index
    %c0_54 = arith.constant 0 : index
    %83 = vector.load %arg6[%c0_53, %c0_54] : memref<1x32xf32, #tpu.memory_space<vmem>>, vector<1x32xf32>
    %84 = vector.shape_cast %83 : vector<1x32xf32> to vector<32xf32>
    %85 = vector.shape_cast %84 : vector<32xf32> to vector<1x1x32xf32>
    %86 = vector.broadcast %85 : vector<1x1x32xf32> to vector<16x16x32xf32>
    %87 = arith.mulf %82, %86 : vector<16x16x32xf32>
    %c0_55 = arith.constant 0 : index
    %c0_56 = arith.constant 0 : index
    %88 = vector.load %arg7[%c0_55, %c0_56] : memref<1x32xf32, #tpu.memory_space<vmem>>, vector<1x32xf32>
    %89 = vector.shape_cast %88 : vector<1x32xf32> to vector<32xf32>
    %90 = vector.shape_cast %89 : vector<32xf32> to vector<1x1x32xf32>
    %91 = vector.broadcast %90 : vector<1x1x32xf32> to vector<16x16x32xf32>
    %92 = arith.addf %87, %91 : vector<16x16x32xf32>
    %93 = vector.shape_cast %92 : vector<16x16x32xf32> to vector<256x32xf32>
    %c0_57 = arith.constant 0 : index
    %c0_58 = arith.constant 0 : index
    %94 = vector.load %arg8[%c0_57, %c0_58] : memref<32x32xf32, #tpu.memory_space<vmem>>, vector<32x32xf32>
    %cst_59 = arith.constant dense<0.000000e+00> : vector<256x32xf32>
    %95 = tpu.matmul %93, %94, %cst_59 {dimension_numbers = #tpu.dot_dimension_numbers<[1], [0], [0], [1], [0, 0, 1, 1], [], []>} : vector<256x32xf32>, vector<32x32xf32>, vector<256x32xf32> -> vector<256x32xf32>
    %96 = vector.shape_cast %95 : vector<256x32xf32> to vector<16x16x32xf32>
    %97 = arith.addf %96, %1 : vector<16x16x32xf32>
    %c0_60 = arith.constant 0 : index
    %c0_61 = arith.constant 0 : index
    %c0_62 = arith.constant 0 : index
    %c0_63 = arith.constant 0 : index
    %98 = vector.load %arg9[%c0_60, %c0_61, %c0_62, %c0_63] : memref<1x16x16x32xf32, #tpu.memory_space<vmem>>, vector<1x16x16x32xf32>
    %99 = vector.shape_cast %98 : vector<1x16x16x32xf32> to vector<16x16x32xf32>
    %100 = vector.shape_cast %97 : vector<16x16x32xf32> to vector<1x16x16x32xf32>
    tpu.vector_store %arg9[%c0_60, %c0_61, %c0_62, %c0_63], %100 {strides = array<i32>} : memref<1x16x16x32xf32, #tpu.memory_space<vmem>>, vector<1x16x16x32xf32>,
    return
  }
  func.func @transform_0(%arg0: i32) -> (i32, i32, i32, i32) {
    %c0_i32 = arith.constant 0 : i32
    %c0_i32_0 = arith.constant 0 : i32
    %c0_i32_1 = arith.constant 0 : i32
    %c0_i32_2 = arith.constant 0 : i32
    return %arg0, %c0_i32, %c0_i32_0, %c0_i32_1 : i32, i32, i32, i32
  }
  func.func @transform_1(%arg0: i32) -> (i32, i32) {
    %c0_i32 = arith.constant 0 : i32
    %c0_i32_0 = arith.constant 0 : i32
    %c0_i32_1 = arith.constant 0 : i32
    return %c0_i32, %c0_i32_0 : i32, i32
  }
  func.func @transform_2(%arg0: i32) -> (i32, i32) {
    %c0_i32 = arith.constant 0 : i32
    %c0_i32_0 = arith.constant 0 : i32
    %c0_i32_1 = arith.constant 0 : i32
    return %c0_i32, %c0_i32_0 : i32, i32
  }
  func.func @transform_3(%arg0: i32) -> (i32, i32) {
    %c0_i32 = arith.constant 0 : i32
    %c0_i32_0 = arith.constant 0 : i32
    %c0_i32_1 = arith.constant 0 : i32
    return %c0_i32, %c0_i32_0 : i32, i32
  }
  func.func @transform_4(%arg0: i32) -> (i32, i32) {
    %c0_i32 = arith.constant 0 : i32
    %c0_i32_0 = arith.constant 0 : i32
    %c0_i32_1 = arith.constant 0 : i32
    return %c0_i32, %c0_i32_0 : i32, i32
  }
  func.func @transform_5(%arg0: i32) -> (i32, i32) {
    %c0_i32 = arith.constant 0 : i32
    %c0_i32_0 = arith.constant 0 : i32
    %c0_i32_1 = arith.constant 0 : i32
    return %c0_i32, %c0_i32_0 : i32, i32
  }
  func.func @transform_6(%arg0: i32) -> (i32, i32) {
    %c0_i32 = arith.constant 0 : i32
    %c0_i32_0 = arith.constant 0 : i32
    %c0_i32_1 = arith.constant 0 : i32
    return %c0_i32, %c0_i32_0 : i32, i32
  }
  func.func @transform_7(%arg0: i32) -> (i32, i32) {
    %c0_i32 = arith.constant 0 : i32
    %c0_i32_0 = arith.constant 0 : i32
    %c0_i32_1 = arith.constant 0 : i32
    return %c0_i32, %c0_i32_0 : i32, i32
  }
  func.func @transform_8(%arg0: i32) -> (i32, i32, i32, i32) {
    %c0_i32 = arith.constant 0 : i32
    %c0_i32_0 = arith.constant 0 : i32
    %c0_i32_1 = arith.constant 0 : i32
    %c0_i32_2 = arith.constant 0 : i32
    return %arg0, %c0_i32, %c0_i32_0, %c0_i32_1 : i32, i32, i32, i32
  }
}

</mosaic_0001>

<llo_original>
// kernel: tpu_custom_call.1
$region0: #{tpu_custom_call.1}
  #allocation0 [shape = 'u32[]', space=smem, size = 0x4, offset = 0x4, fixed_abs, tag = 'smem constant byte address 0x4 - core index']
  #allocation1 [shape = 'u32[144,128]{1,0:T(1,128)}', space=vmem, size = 0x12000, scoped, tag = 'internal scratch']
  #allocation2 [shape = 'f32[18,32,32]{2,1,0:T(8,128)}', space=vmem, size = 0x48000, scoped, tag = 'scratch operand']
  %s0 = inlined_call_operand.hbm [shape: f32[2,16,16,32], index: 0, kind: input, shape index: {}]
  %s1 = inlined_call_operand.vmem [shape: f32[1,32], index: 1, kind: input, shape index: {}]
  %s2 = inlined_call_operand.vmem [shape: f32[1,32], index: 2, kind: input, shape index: {}]
  %s3 = inlined_call_operand.hbm [shape: f32[32,32], index: 3, kind: input, shape index: {}]
  %s4 = inlined_call_operand.hbm [shape: f32[9,32], index: 4, kind: input, shape index: {}]
  %s5 = inlined_call_operand.vmem [shape: f32[1,32], index: 5, kind: input, shape index: {}]
  %s6 = inlined_call_operand.vmem [shape: f32[1,32], index: 6, kind: input, shape index: {}]
  %s7 = inlined_call_operand.hbm [shape: f32[32,32], index: 7, kind: input, shape index: {}]
  %s8 = inlined_call_operand.hbm [shape: f32[2,16,16,32], index: 8, kind: output, shape index: {}]
  %s9 = sld [smem:[#allocation0]]
  $region81: #{tpu_custom_call.1} parent=0
    _
  %s11 = ssub.s32 1, %s9
  %s12 = scalar_select 0, %s11, %s9
  $region1: #{tpu_custom_call.1} parent=0
    #allocation3 [shape = 'u8[262144]{0}', space=vmem, size = 0x40000, scoped, tag = 'input window, operand 0']
    #allocation4 [shape = 's32[2]{0}', space=sflag, size = 0x8, scoped, tag = 'scoped memory for tpu_custom_call.1']
    #allocation5 [shape = 's32[2]{0}', space=sflag, size = 0x8, scoped, tag = 'scoped memory for tpu_custom_call.1']
    #allocation6 [shape = 'u8[16384]{0}', space=vmem, size = 0x4000, scoped, tag = 'input window, operand 3, single buffered']
    #allocation7 [shape = 's32[1]{0}', space=sflag, size = 0x4, scoped, tag = 'scoped memory for tpu_custom_call.1']
    #allocation8 [shape = 'u8[8192]{0}', space=vmem, size = 0x2000, scoped, tag = 'input window, operand 4, single buffered']
    #allocation9 [shape = 'u8[16384]{0}', space=vmem, size = 0x4000, scoped, tag = 'input window, operand 7, single buffered']
    #allocation10 [shape = 's32[1]{0}', space=sflag, size = 0x4, scoped, tag = 'scoped memory for tpu_custom_call.1']
    #allocation11 [shape = 'u8[262144]{0}', space=vmem, size = 0x40000, scoped, tag = 'output window, operand 0']
    %13 = vsyncpa [#allocation4], 0
    %s14 = scalar_lea.sflag [#allocation4], 1
    %15 = vsyncpa %s14, 0
    %16 = vsyncpa [#allocation7], 0
    %17 = vsyncpa [#allocation10], 0
    %18 = vsyncpa [#allocation5], 0
    %s19 = scalar_lea.sflag [#allocation5], 1
    %20 = vsyncpa %s19, 0
    loop: start=0, step=1, limit=4
    $region2: #{tpu_custom_call.1} parent=1 // loop_pre_header
      _
    $region3: #{tpu_custom_call.1} parent=1 // loop_header
      %s22 = sphi 0, %s26
      %p23 = scmp.ge.s32.totalorder %s22, 4
      %s32 = sphi 0, %s34
      %s35 = sphi 0, %s32
      %s36 = sphi 0, %s35
      %s52 = sphi 0, %s36
      %s56 = sphi 0, %s56
      %s58 = sphi 0, %s56
      %s59 = sphi 0, %s58
      %s73 = sphi 0, %s59
      %s77 = sphi 0, %s77
      %s79 = sphi 0, %s77
      %s80 = sphi 0, %s79
      %s94 = sphi 0, %s80
      %s98 = sphi 0, %s98
      %s100 = sphi 0, %s98
      %s101 = sphi 0, %s100
      %s115 = sphi 0, %s101
      %s119 = sphi 0, %s119
      %s121 = sphi 0, %s119
      %s122 = sphi 0, %s121
      %s136 = sphi 0, %s122
      %s140 = sphi 0, %s140
      %s142 = sphi 0, %s140
      %s143 = sphi 0, %s142
      %s157 = sphi 0, %s143
      %s161 = sphi 0, %s161
      %s163 = sphi 0, %s161
      %s164 = sphi 0, %s163
      %s178 = sphi 0, %s164
      %s182 = sphi 0, %s182
      %s184 = sphi 0, %s182
      %s185 = sphi 0, %s184
      %s199 = sphi 0, %s185
      %s205 = sphi 0, %s207
      %s208 = sphi 0, %s205
      %s209 = sphi 0, %s208
      %s225 = sphi 0, %s209
    $region4: #{tpu_custom_call.1} parent=1 // loop_header_branch
      %25 = sbr.rel (%p23) target = $region8
    $region5: #{tpu_custom_call.1} parent=1 // loop_body
      %s27 = ssub.s32 %s22, 1
      %s28 = ssub.s32 %s22, 2
      %s29 = sadd.s32 %s22, 1
      %s30 = ssub.s32 %s22, %s29
      %p31 = scmp.eq.s32.totalorder %s30, 0
      %s33 = sadd.s32 %s32, 1
      %s34 = scalar_select %p31, %s32, %s33
      %p37 = pneg %p31
      %p38 = scmp.eq.s32.totalorder %s22, 1
      %p39 = por %p37, %p38
      %p40 = scmp.ne.s32.totalorder %s32, %s35
      %p41 = scmp.eq.s32.totalorder %s22, 0
      %p42 = por %p40, %p41
      %p43 = scmp.ne.s32.totalorder %s32, %s35
      %p44 = scmp.eq.s32.totalorder %s27, 1
      %p45 = por %p43, %p44
      %p46 = scmp.ne.s32.totalorder %s35, %s36
      %p47 = scmp.eq.s32.totalorder %s27, 0
      %p48 = por %p46, %p47
      %p49 = scmp.ne.s32.totalorder %s35, %s36
      %p50 = scmp.eq.s32.totalorder %s28, 1
      %p51 = por %p49, %p50
      %p53 = scmp.ne.s32.totalorder %s36, %s52
      %p54 = scmp.eq.s32.totalorder %s28, 0
      %p55 = por %p53, %p54
      %s57 = sadd.s32 %s56, 1
      %p60 = scmp.eq.s32.totalorder %s22, 1
      %p61 = scmp.ne.s32.totalorder %s56, %s58
      %p62 = scmp.eq.s32.totalorder %s22, 0
      %p63 = por %p61, %p62
      %p64 = scmp.ne.s32.totalorder %s56, %s58
      %p65 = scmp.eq.s32.totalorder %s27, 1
      %p66 = por %p64, %p65
      %p67 = scmp.ne.s32.totalorder %s58, %s59
      %p68 = scmp.eq.s32.totalorder %s27, 0
      %p69 = por %p67, %p68
      %p70 = scmp.ne.s32.totalorder %s58, %s59
      %p71 = scmp.eq.s32.totalorder %s28, 1
      %p72 = por %p70, %p71
      %p74 = scmp.ne.s32.totalorder %s59, %s73
      %p75 = scmp.eq.s32.totalorder %s28, 0
      %p76 = por %p74, %p75
      %s78 = sadd.s32 %s77, 1
      %p81 = scmp.eq.s32.totalorder %s22, 1
      %p82 = scmp.ne.s32.totalorder %s77, %s79
      %p83 = scmp.eq.s32.totalorder %s22, 0
      %p84 = por %p82, %p83
      %p85 = scmp.ne.s32.totalorder %s77, %s79
      %p86 = scmp.eq.s32.totalorder %s27, 1
      %p87 = por %p85, %p86
      %p88 = scmp.ne.s32.totalorder %s79, %s80
      %p89 = scmp.eq.s32.totalorder %s27, 0
      %p90 = por %p88, %p89
      %p91 = scmp.ne.s32.totalorder %s79, %s80
      %p92 = scmp.eq.s32.totalorder %s28, 1
      %p93 = por %p91, %p92
      %p95 = scmp.ne.s32.totalorder %s80, %s94
      %p96 = scmp.eq.s32.totalorder %s28, 0
      %p97 = por %p95, %p96
      %s99 = sadd.s32 %s98, 1
      %p102 = scmp.eq.s32.totalorder %s22, 1
      %p103 = scmp.ne.s32.totalorder %s98, %s100
      %p104 = scmp.eq.s32.totalorder %s22, 0
      %p105 = por %p103, %p104
      %p106 = scmp.ne.s32.totalorder %s98, %s100
      %p107 = scmp.eq.s32.totalorder %s27, 1
      %p108 = por %p106, %p107
      %p109 = scmp.ne.s32.totalorder %s100, %s101
      %p110 = scmp.eq.s32.totalorder %s27, 0
      %p111 = por %p109, %p110
      %p112 = scmp.ne.s32.totalorder %s100, %s101
      %p113 = scmp.eq.s32.totalorder %s28, 1
      %p114 = por %p112, %p113
      %p116 = scmp.ne.s32.totalorder %s101, %s115
      %p117 = scmp.eq.s32.totalorder %s28, 0
      %p118 = por %p116, %p117
      %s120 = sadd.s32 %s119, 1
      %p123 = scmp.eq.s32.totalorder %s22, 1
      %p124 = scmp.ne.s32.totalorder %s119, %s121
      %p125 = scmp.eq.s32.totalorder %s22, 0
      %p126 = por %p124, %p125
      %p127 = scmp.ne.s32.totalorder %s119, %s121
      %p128 = scmp.eq.s32.totalorder %s27, 1
      %p129 = por %p127, %p128
      %p130 = scmp.ne.s32.totalorder %s121, %s122
      %p131 = scmp.eq.s32.totalorder %s27, 0
      %p132 = por %p130, %p131
      %p133 = scmp.ne.s32.totalorder %s121, %s122
      %p134 = scmp.eq.s32.totalorder %s28, 1
      %p135 = por %p133, %p134
      %p137 = scmp.ne.s32.totalorder %s122, %s136
      %p138 = scmp.eq.s32.totalorder %s28, 0
      %p139 = por %p137, %p138
      %s141 = sadd.s32 %s140, 1
      %p144 = scmp.eq.s32.totalorder %s22, 1
      %p145 = scmp.ne.s32.totalorder %s140, %s142
      %p146 = scmp.eq.s32.totalorder %s22, 0
      %p147 = por %p145, %p146
      %p148 = scmp.ne.s32.totalorder %s140, %s142
      %p149 = scmp.eq.s32.totalorder %s27, 1
      %p150 = por %p148, %p149
      %p151 = scmp.ne.s32.totalorder %s142, %s143
      %p152 = scmp.eq.s32.totalorder %s27, 0
      %p153 = por %p151, %p152
      %p154 = scmp.ne.s32.totalorder %s142, %s143
      %p155 = scmp.eq.s32.totalorder %s28, 1
      %p156 = por %p154, %p155
      %p158 = scmp.ne.s32.totalorder %s143, %s157
      %p159 = scmp.eq.s32.totalorder %s28, 0
      %p160 = por %p158, %p159
      %s162 = sadd.s32 %s161, 1
      %p165 = scmp.eq.s32.totalorder %s22, 1
      %p166 = scmp.ne.s32.totalorder %s161, %s163
      %p167 = scmp.eq.s32.totalorder %s22, 0
      %p168 = por %p166, %p167
      %p169 = scmp.ne.s32.totalorder %s161, %s163
      %p170 = scmp.eq.s32.totalorder %s27, 1
      %p171 = por %p169, %p170
      %p172 = scmp.ne.s32.totalorder %s163, %s164
      %p173 = scmp.eq.s32.totalorder %s27, 0
      %p174 = por %p172, %p173
      %p175 = scmp.ne.s32.totalorder %s163, %s164
      %p176 = scmp.eq.s32.totalorder %s28, 1
      %p177 = por %p175, %p176
      %p179 = scmp.ne.s32.totalorder %s164, %s178
      %p180 = scmp.eq.s32.totalorder %s28, 0
      %p181 = por %p179, %p180
      %s183 = sadd.s32 %s182, 1
      %p186 = scmp.eq.s32.totalorder %s22, 1
      %p187 = scmp.ne.s32.totalorder %s182, %s184
      %p188 = scmp.eq.s32.totalorder %s22, 0
      %p189 = por %p187, %p188
      %p190 = scmp.ne.s32.totalorder %s182, %s184
      %p191 = scmp.eq.s32.totalorder %s27, 1
      %p192 = por %p190, %p191
      %p193 = scmp.ne.s32.totalorder %s184, %s185
      %p194 = scmp.eq.s32.totalorder %s27, 0
      %p195 = por %p193, %p194
      %p196 = scmp.ne.s32.totalorder %s184, %s185
      %p197 = scmp.eq.s32.totalorder %s28, 1
      %p198 = por %p196, %p197
      %p200 = scmp.ne.s32.totalorder %s185, %s199
      %p201 = scmp.eq.s32.totalorder %s28, 0
      %p202 = por %p200, %p201
      %s203 = ssub.s32 %s22, %s29
      %p204 = scmp.eq.s32.totalorder %s203, 0
      %s206 = sadd.s32 %s205, 1
      %s207 = scalar_select %p204, %s205, %s206
      %p210 = pneg %p204
      %p211 = scmp.eq.s32.totalorder %s22, 1
      %p212 = por %p210, %p211
      %p213 = scmp.ne.s32.totalorder %s205, %s208
      %p214 = scmp.eq.s32.totalorder %s22, 0
      %p215 = por %p213, %p214
      %p216 = scmp.ne.s32.totalorder %s205, %s208
      %p217 = scmp.eq.s32.totalorder %s27, 1
      %p218 = por %p216, %p217
      %p219 = scmp.ne.s32.totalorder %s208, %s209
      %p220 = scmp.eq.s32.totalorder %s27, 0
      %p221 = por %p219, %p220
      %p222 = scmp.ne.s32.totalorder %s208, %s209
      %p223 = scmp.eq.s32.totalorder %s28, 1
      %p224 = por %p222, %p223
      %p226 = scmp.ne.s32.totalorder %s209, %s225
      %p227 = scmp.eq.s32.totalorder %s28, 0
      %p228 = por %p226, %p227
      %p229 = scmp.le.s32.totalorder 1, %s22
      %p230 = scmp.lt.s32.totalorder %s22, 3
      %p231 = pnand %p229, %p230
      %p232 = pneg %p231
      // Predicated region
      $region9: #{tpu_custom_call.1} parent=5 // pred_check
        _
      $region10: #{tpu_custom_call.1} parent=5 // pred_check_branch
        %234 = sbr.rel (%p231) target = $region12
      $region11: #{tpu_custom_call.1} parent=5 // pred_region
        %s235 = ssub.s32 %s22, 1
        // Predicated region
        $region13: #{tpu_custom_call.1} parent=11 // pred_check
          %p236 = pneg %p69
        $region14: #{tpu_custom_call.1} parent=11 // pred_check_branch
          %238 = sbr.rel (%p236) target = $region16
        $region15: #{tpu_custom_call.1} parent=11 // pred_region
          _
        $region16: #{tpu_custom_call.1} parent=11 // pred_fallthru
          _
        // Predicated region
        $region17: #{tpu_custom_call.1} parent=11 // pred_check
          %p239 = pneg %p90
        $region18: #{tpu_custom_call.1} parent=11 // pred_check_branch
          %241 = sbr.rel (%p239) target = $region20
        $region19: #{tpu_custom_call.1} parent=11 // pred_region
          _
        $region20: #{tpu_custom_call.1} parent=11 // pred_fallthru
          _
        // Predicated region
        $region21: #{tpu_custom_call.1} parent=11 // pred_check
          %p242 = pneg %p111
        $region22: #{tpu_custom_call.1} parent=11 // pred_check_branch
          %244 = sbr.rel (%p242) target = $region24
        $region23: #{tpu_custom_call.1} parent=11 // pred_region
          %s246 = ssub.s32 512, 512
          %247 = vsyncadd [#allocation7], %s246
          %s248 = sshll.u32 [#allocation6], 4
          %s249 = int_to_ptr.vmem [resolvable:$true] %s248
          %254 = dma.hbm_to_vmem [thread:$0]  %s3, 512, %s249, [#allocation7], 128, 128, 8
        $region24: #{tpu_custom_call.1} parent=11 // pred_fallthru
          _
        // Predicated region
        $region25: #{tpu_custom_call.1} parent=11 // pred_check
          %p255 = pneg %p132
        $region26: #{tpu_custom_call.1} parent=11 // pred_check_branch
          %257 = sbr.rel (%p255) target = $region28
        $region27: #{tpu_custom_call.1} parent=11 // pred_region
          %s259 = ssub.s32 256, 256
          %260 = vsyncadd [#allocation7], %s259
          %s261 = sshll.u32 [#allocation8], 4
          %s262 = int_to_ptr.vmem [resolvable:$true] %s261
          %267 = dma.hbm_to_vmem [thread:$0]  %s4, 256, %s262, [#allocation7], 128, 128, 8
        $region28: #{tpu_custom_call.1} parent=11 // pred_fallthru
          _
        // Predicated region
        $region29: #{tpu_custom_call.1} parent=11 // pred_check
          %p268 = pneg %p153
        $region30: #{tpu_custom_call.1} parent=11 // pred_check_branch
          %270 = sbr.rel (%p268) target = $region32
        $region31: #{tpu_custom_call.1} parent=11 // pred_region
          _
        $region32: #{tpu_custom_call.1} parent=11 // pred_fallthru
          _
        // Predicated region
        $region33: #{tpu_custom_call.1} parent=11 // pred_check
          %p271 = pneg %p174
        $region34: #{tpu_custom_call.1} parent=11 // pred_check_branch
          %273 = sbr.rel (%p271) target = $region36
        $region35: #{tpu_custom_call.1} parent=11 // pred_region
          _
        $region36: #{tpu_custom_call.1} parent=11 // pred_fallthru
          _
        // Predicated region
        $region37: #{tpu_custom_call.1} parent=11 // pred_check
          %p274 = pneg %p195
        $region38: #{tpu_custom_call.1} parent=11 // pred_check_branch
          %276 = sbr.rel (%p274) target = $region40
        $region39: #{tpu_custom_call.1} parent=11 // pred_region
          %s278 = ssub.s32 512, 512
          %279 = vsyncadd [#allocation10], %s278
          %s280 = sshll.u32 [#allocation9], 4
          %s281 = int_to_ptr.vmem [resolvable:$true] %s280
          %286 = dma.hbm_to_vmem [thread:$0]  %s7, 512, %s281, [#allocation10], 128, 128, 8
        $region40: #{tpu_custom_call.1} parent=11 // pred_fallthru
          _
      $region12: #{tpu_custom_call.1} parent=5 // pred_fallthru
        _
      %p287 = scmp.lt.s32.totalorder %s22, 2
      // Predicated region
      $region41: #{tpu_custom_call.1} parent=5 // pred_check
        %p288 = pneg %p287
      $region42: #{tpu_custom_call.1} parent=5 // pred_check_branch
        %290 = sbr.rel (%p288) target = $region44
      $region43: #{tpu_custom_call.1} parent=5 // pred_region
        // Predicated region
        $region45: #{tpu_custom_call.1} parent=43 // pred_check
          %p291 = pneg %p42
        $region46: #{tpu_custom_call.1} parent=43 // pred_check_branch
          %293 = sbr.rel (%p291) target = $region48
        $region47: #{tpu_custom_call.1} parent=43 // pred_region
          %s294 = sand.u32 %s32, 1
          %s295 = scalar_lea.sflag [#allocation4], %s294
          %s296 = sand.u32 %s32, 1
          %s297 = smul.addr %s296, 256
          %s298 = scalar_lea.vmem [#allocation3], %s297
          %s300 = ssub.s32 4096, 4096
          %301 = vsyncadd %s295, %s300
          %s302 = smul.addr %s22, 32
          %s303 = smul.addr %s302, 128
          %s304 = scalar_lea.hbm %s0, %s303
          %s305 = sshll.u32 %s298, 4
          %s306 = int_to_ptr.vmem [resolvable:$true] %s305
          %311 = dma.hbm_to_vmem [thread:$0]  %s304, 4096, %s306, %s295, 128, 128, 8
        $region48: #{tpu_custom_call.1} parent=43 // pred_fallthru
          _
      $region44: #{tpu_custom_call.1} parent=5 // pred_fallthru
        _
      %p312 = scmp.le.s32.totalorder 1, %s22
      %p313 = scmp.lt.s32.totalorder %s22, 3
      %p314 = pnand %p312, %p313
      %p315 = pneg %p314
      // Predicated region
      $region49: #{tpu_custom_call.1} parent=5 // pred_check
        _
      $region50: #{tpu_custom_call.1} parent=5 // pred_check_branch
        %317 = sbr.rel (%p314) target = $region52
      $region51: #{tpu_custom_call.1} parent=5 // pred_region
        %s318 = ssub.s32 %s22, 1
        %s319 = sand.u32 %s35, 1
        %s320 = scalar_lea.sflag [#allocation4], %s319
        %s321 = sand.u32 %s35, 1
        %s322 = smul.addr %s321, 256
        %s323 = scalar_lea.vmem [#allocation3], %s322
        // Predicated region
        $region53: #{tpu_custom_call.1} parent=51 // pred_check
          %p324 = pneg %p48
        $region54: #{tpu_custom_call.1} parent=51 // pred_check_branch
          %326 = sbr.rel (%p324) target = $region56
        $region55: #{tpu_custom_call.1} parent=51 // pred_region
          %327 = dma.done %s320, 4096
        $region56: #{tpu_custom_call.1} parent=51 // pred_fallthru
          _
        // Predicated region
        $region57: #{tpu_custom_call.1} parent=51 // pred_check
          %p328 = pneg %p111
        $region58: #{tpu_custom_call.1} parent=51 // pred_check_branch
          %330 = sbr.rel (%p328) target = $region60
        $region59: #{tpu_custom_call.1} parent=51 // pred_region
          %331 = dma.done [#allocation7], 512
        $region60: #{tpu_custom_call.1} parent=51 // pred_fallthru
          _
        // Predicated region
        $region61: #{tpu_custom_call.1} parent=51 // pred_check
          %p332 = pneg %p132
        $region62: #{tpu_custom_call.1} parent=51 // pred_check_branch
          %334 = sbr.rel (%p332) target = $region64
        $region63: #{tpu_custom_call.1} parent=51 // pred_region
          %335 = dma.done [#allocation7], 256
        $region64: #{tpu_custom_call.1} parent=51 // pred_fallthru
          _
        // Predicated region
        $region65: #{tpu_custom_call.1} parent=51 // pred_check
          %p336 = pneg %p195
        $region66: #{tpu_custom_call.1} parent=51 // pred_check_branch
          %338 = sbr.rel (%p336) target = $region68
        $region67: #{tpu_custom_call.1} parent=51 // pred_region
          %339 = dma.done [#allocation10], 512
        $region68: #{tpu_custom_call.1} parent=51 // pred_fallthru
          _
        %s340 = sand.u32 %s35, 1
        %s341 = scalar_lea.sflag [#allocation4], %s340
        %s342 = sand.u32 %s35, 1
        %s343 = smul.addr %s342, 256
        %s344 = scalar_lea.vmem [#allocation3], %s343
        %p345 = pneg %p48
        %p346 = pneg %p45
        %p347 = pneg %p69
        %p348 = pneg %p66
        %p349 = pneg %p90
        %p350 = pneg %p87
        %p351 = pneg %p111
        %p352 = pneg %p108
        %p353 = pneg %p132
        %p354 = pneg %p129
        %p355 = pneg %p153
        %p356 = pneg %p150
        %p357 = pneg %p174
        %p358 = pneg %p171
        %p359 = pneg %p195
        %p360 = pneg %p192
        %p361 = pneg %p221
        %p362 = pneg %p218
        %s363 = sand.u32 %s208, 1
        %s364 = scalar_lea.sflag [#allocation5], %s363
        %s365 = sand.u32 %s208, 1
        %s366 = smul.addr %s365, 256
        %s367 = scalar_lea.vmem [#allocation11], %s366
        %v368 = vld [vmem:[%s323] sm:$0xff]
        %v369 = vld [vmem:[%s323 + $0x8] sm:$0xff]
        %v370 = vld [vmem:[%s323 + $0x10] sm:$0xff]
        %v371 = vld [vmem:[%s323 + $0x18] sm:$0xff]
        %v372 = vld [vmem:[%s323 + $0x20] sm:$0xff]
        %v373 = vld [vmem:[%s323 + $0x28] sm:$0xff]
        %v374 = vld [vmem:[%s323 + $0x30] sm:$0xff]
        %v375 = vld [vmem:[%s323 + $0x38] sm:$0xff]
        %v376 = vld [vmem:[%s323 + $0x40] sm:$0xff]
        %v377 = vld [vmem:[%s323 + $0x48] sm:$0xff]
        %v378 = vld [vmem:[%s323 + $0x50] sm:$0xff]
        %v379 = vld [vmem:[%s323 + $0x58] sm:$0xff]
        %v380 = vld [vmem:[%s323 + $0x60] sm:$0xff]
        %v381 = vld [vmem:[%s323 + $0x68] sm:$0xff]
        %v382 = vld [vmem:[%s323 + $0x70] sm:$0xff]
        %v383 = vld [vmem:[%s323 + $0x78] sm:$0xff]
        %v384 = vld [vmem:[%s323 + $0x80] sm:$0xff]
        %v385 = vld [vmem:[%s323 + $0x88] sm:$0xff]
        %v386 = vld [vmem:[%s323 + $0x90] sm:$0xff]
        %v387 = vld [vmem:[%s323 + $0x98] sm:$0xff]
        %v388 = vld [vmem:[%s323 + $0xa0] sm:$0xff]
        %v389 = vld [vmem:[%s323 + $0xa8] sm:$0xff]
        %v390 = vld [vmem:[%s323 + $0xb0] sm:$0xff]
        %v391 = vld [vmem:[%s323 + $0xb8] sm:$0xff]
        %v392 = vld [vmem:[%s323 + $0xc0] sm:$0xff]
        %v393 = vld [vmem:[%s323 + $0xc8] sm:$0xff]
        %v394 = vld [vmem:[%s323 + $0xd0] sm:$0xff]
        %v395 = vld [vmem:[%s323 + $0xd8] sm:$0xff]
        %v396 = vld [vmem:[%s323 + $0xe0] sm:$0xff]
        %v397 = vld [vmem:[%s323 + $0xe8] sm:$0xff]
        %v398 = vld [vmem:[%s323 + $0xf0] sm:$0xff]
        %v399 = vld [vmem:[%s323 + $0xf8] sm:$0xff]
        %v400 = vld [vmem:[%s1] sm:$0x1]
        %v402 = vlaneseq
        %v403 = vshrl.u32 %v402, 7
        %v404 = vsub.s32 0, %v403
        %v405 = vrot.slane %v400, %v404
        %v407 = vmul.f32 %v368, %v405
        %v408 = vmul.f32 %v369, %v405
        %v409 = vmul.f32 %v370, %v405
        %v410 = vmul.f32 %v371, %v405
        %v411 = vmul.f32 %v372, %v405
        %v412 = vmul.f32 %v373, %v405
        %v413 = vmul.f32 %v374, %v405
        %v414 = vmul.f32 %v375, %v405
        %v415 = vmul.f32 %v376, %v405
        %v416 = vmul.f32 %v377, %v405
        %v417 = vmul.f32 %v378, %v405
        %v418 = vmul.f32 %v379, %v405
        %v419 = vmul.f32 %v380, %v405
        %v420 = vmul.f32 %v381, %v405
        %v421 = vmul.f32 %v382, %v405
        %v422 = vmul.f32 %v383, %v405
        %v423 = vmul.f32 %v384, %v405
        %v424 = vmul.f32 %v385, %v405
        %v425 = vmul.f32 %v386, %v405
        %v426 = vmul.f32 %v387, %v405
        %v427 = vmul.f32 %v388, %v405
        %v428 = vmul.f32 %v389, %v405
        %v429 = vmul.f32 %v390, %v405
        %v430 = vmul.f32 %v391, %v405
        %v431 = vmul.f32 %v392, %v405
        %v432 = vmul.f32 %v393, %v405
        %v433 = vmul.f32 %v394, %v405
        %v434 = vmul.f32 %v395, %v405
        %v435 = vmul.f32 %v396, %v405
        %v436 = vmul.f32 %v397, %v405
        %v437 = vmul.f32 %v398, %v405
        %v438 = vmul.f32 %v399, %v405
        %v439 = vld [vmem:[%s2] sm:$0x1]
        %v441 = vlaneseq
        %v442 = vshrl.u32 %v441, 7
        %v443 = vsub.s32 0, %v442
        %v444 = vrot.slane %v439, %v443
        %v446 = vadd.f32 %v407, %v444
        %v447 = vadd.f32 %v408, %v444
        %v448 = vadd.f32 %v409, %v444
        %v449 = vadd.f32 %v410, %v444
        %v450 = vadd.f32 %v411, %v444
        %v451 = vadd.f32 %v412, %v444
        %v452 = vadd.f32 %v413, %v444
        %v453 = vadd.f32 %v414, %v444
        %v454 = vadd.f32 %v415, %v444
        %v455 = vadd.f32 %v416, %v444
        %v456 = vadd.f32 %v417, %v444
        %v457 = vadd.f32 %v418, %v444
        %v458 = vadd.f32 %v419, %v444
        %v459 = vadd.f32 %v420, %v444
        %v460 = vadd.f32 %v421, %v444
        %v461 = vadd.f32 %v422, %v444
        %v462 = vadd.f32 %v423, %v444
        %v463 = vadd.f32 %v424, %v444
        %v464 = vadd.f32 %v425, %v444
        %v465 = vadd.f32 %v426, %v444
        %v466 = vadd.f32 %v427, %v444
        %v467 = vadd.f32 %v428, %v444
        %v468 = vadd.f32 %v429, %v444
        %v469 = vadd.f32 %v430, %v444
        %v470 = vadd.f32 %v431, %v444
        %v471 = vadd.f32 %v432, %v444
        %v472 = vadd.f32 %v433, %v444
        %v473 = vadd.f32 %v434, %v444
        %v474 = vadd.f32 %v435, %v444
        %v475 = vadd.f32 %v436, %v444
        %v476 = vadd.f32 %v437, %v444
        %v477 = vadd.f32 %v438, %v444
        %v478 = vld [vmem:[#allocation6] sm:$0xff]
        %v479 = vld [vmem:[#allocation6 + $0x8] sm:$0xff]
        %v480 = vld [vmem:[#allocation6 + $0x10] sm:$0xff]
        %v481 = vld [vmem:[#allocation6 + $0x18] sm:$0xff]
        %vm482 = vcmask 261120
        %v484 = vsel %vm482, %v446, 0
        %v487 = vsel %vm482, %v447, 0
        %v490 = vsel %vm482, %v448, 0
        %v493 = vsel %vm482, %v449, 0
        %v496 = vsel %vm482, %v450, 0
        %v499 = vsel %vm482, %v451, 0
        %v502 = vsel %vm482, %v452, 0
        %v505 = vsel %vm482, %v453, 0
        %v508 = vsel %vm482, %v454, 0
        %v511 = vsel %vm482, %v455, 0
        %v514 = vsel %vm482, %v456, 0
        %v517 = vsel %vm482, %v457, 0
        %v520 = vsel %vm482, %v458, 0
        %v523 = vsel %vm482, %v459, 0
        %v526 = vsel %vm482, %v460, 0
        %v529 = vsel %vm482, %v461, 0
        %v532 = vsel %vm482, %v462, 0
        %v535 = vsel %vm482, %v463, 0
        %v538 = vsel %vm482, %v464, 0
        %v541 = vsel %vm482, %v465, 0
        %v544 = vsel %vm482, %v466, 0
        %v547 = vsel %vm482, %v467, 0
        %v550 = vsel %vm482, %v468, 0
        %v553 = vsel %vm482, %v469, 0
        %v556 = vsel %vm482, %v470, 0
        %v559 = vsel %vm482, %v471, 0
        %v562 = vsel %vm482, %v472, 0
        %v565 = vsel %vm482, %v473, 0
        %v568 = vsel %vm482, %v474, 0
        %v571 = vsel %vm482, %v475, 0
        %v574 = vsel %vm482, %v476, 0
        %v577 = vsel %vm482, %v477, 0
        %579 = vmatprep.subr.mxu0 0.0
        %580 = vmatpush1.msra.mxu0 0.0
        %581 = vmatprep.subr.mxu0 0.0
        %582 = vmatpush1.msra.mxu0 0.0
        %583 = vmatprep.subr.mxu0 0.0
        %584 = vmatpush1.msra.mxu0 0.0
        %585 = vmatprep.subr.mxu0 0.0
        %586 = vmatpush1.msra.mxu0 0.0
        %587 = vmatprep.subr.mxu0 0.0
        %588 = vmatpush1.msra.mxu0 0.0
        %589 = vmatprep.subr.mxu0 0.0
        %590 = vmatpush1.msra.mxu0 0.0
        %591 = vmatprep.subr.mxu0 0.0
        %592 = vmatpush1.msra.mxu0 0.0
        %593 = vmatprep.subr.mxu0 0.0
        %594 = vmatpush1.msra.mxu0 0.0
        %595 = vmatprep.subr.mxu0 0.0
        %596 = vmatpush1.msra.mxu0 0.0
        %597 = vmatprep.subr.mxu0 0.0
        %598 = vmatpush1.msra.mxu0 0.0
        %599 = vmatprep.subr.mxu0 0.0
        %600 = vmatpush1.msra.mxu0 0.0
        %601 = vmatprep.subr.mxu0 0.0
        %602 = vmatpush1.msra.mxu0 0.0
        %603 = vmatprep.subr.mxu0 0.0
        %604 = vmatpush1.msra.mxu0 %v481
        %605 = vmatprep.subr.mxu0 0.0
        %606 = vmatpush1.msra.mxu0 %v480
        %607 = vmatprep.subr.mxu0 0.0
        %608 = vmatpush1.msra.mxu0 %v479
        %609 = vmatprep.subr.mxu0 0.0
        %610 = vmatpush1.msra.mxu0 %v478
        %611 = vmatprep.subr.mxu0 0.0
        %612 = vmatpush2.msra.mxu0 0.0
        %613 = vmatprep.subr.mxu0 0.0
        %614 = vmatpush2.msra.mxu0 0.0
        %615 = vmatprep.subr.mxu0 0.0
        %616 = vmatpush2.msra.mxu0 0.0
        %617 = vmatprep.subr.mxu0 0.0
        %618 = vmatpush2.msra.mxu0 0.0
        %619 = vmatprep.subr.mxu0 0.0
        %620 = vmatpush2.msra.mxu0 0.0
        %621 = vmatprep.subr.mxu0 0.0
        %622 = vmatpush2.msra.mxu0 0.0
        %623 = vmatprep.subr.mxu0 0.0
        %624 = vmatpush2.msra.mxu0 0.0
        %625 = vmatprep.subr.mxu0 0.0
        %626 = vmatpush2.msra.mxu0 0.0
        %627 = vmatprep.subr.mxu0 0.0
        %628 = vmatpush2.msra.mxu0 0.0
        %629 = vmatprep.subr.mxu0 0.0
        %630 = vmatpush2.msra.mxu0 0.0
        %631 = vmatprep.subr.mxu0 0.0
        %632 = vmatpush2.msra.mxu0 0.0
        %633 = vmatprep.subr.mxu0 0.0
        %634 = vmatpush2.msra.mxu0 0.0
        %635 = vmatprep.subr.mxu0 0.0
        %636 = vmatpush2.msra.mxu0 0.0
        %637 = vmatprep.subr.mxu0 0.0
        %638 = vmatpush2.msra.mxu0 0.0
        %639 = vmatprep.subr.mxu0 0.0
        %640 = vmatpush2.msra.mxu0 0.0
        %641 = vmatprep.subr.mxu0 0.0
        %642 = vmatpush2.msra.mxu0 0.0
        %643 = vmatprep.mubr.f32.mxu0 0.0
        %644 = vmatmul.mubr.f32.gmra.mxu0 %v484
        %v645 = vpop.f32.mrf.mxu0
        %v646 = vadd.f32 0.0, %v645
        %v647 = vpop.f32.mrf.mxu0
        %648 = vmatprep.mubr.f32.mxu0 0.0
        %649 = vmatmul.mubr.f32.gmra.mxu0 %v487
        %v650 = vpop.f32.mrf.mxu0
        %v651 = vadd.f32 0.0, %v650
        %v652 = vpop.f32.mrf.mxu0
        %653 = vmatprep.mubr.f32.mxu0 0.0
        %654 = vmatmul.mubr.f32.gmra.mxu0 %v490
        %v655 = vpop.f32.mrf.mxu0
        %v656 = vadd.f32 0.0, %v655
        %v657 = vpop.f32.mrf.mxu0
        %658 = vmatprep.mubr.f32.mxu0 0.0
        %659 = vmatmul.mubr.f32.gmra.mxu0 %v493
        %v660 = vpop.f32.mrf.mxu0
        %v661 = vadd.f32 0.0, %v660
        %v662 = vpop.f32.mrf.mxu0
        %663 = vmatprep.mubr.f32.mxu0 0.0
        %664 = vmatmul.mubr.f32.gmra.mxu0 %v496
        %v665 = vpop.f32.mrf.mxu0
        %v666 = vadd.f32 0.0, %v665
        %v667 = vpop.f32.mrf.mxu0
        %668 = vmatprep.mubr.f32.mxu0 0.0
        %669 = vmatmul.mubr.f32.gmra.mxu0 %v499
        %v670 = vpop.f32.mrf.mxu0
        %v671 = vadd.f32 0.0, %v670
        %v672 = vpop.f32.mrf.mxu0
        %673 = vmatprep.mubr.f32.mxu0 0.0
        %674 = vmatmul.mubr.f32.gmra.mxu0 %v502
        %v675 = vpop.f32.mrf.mxu0
        %v676 = vadd.f32 0.0, %v675
        %v677 = vpop.f32.mrf.mxu0
        %678 = vmatprep.mubr.f32.mxu0 0.0
        %679 = vmatmul.mubr.f32.gmra.mxu0 %v505
        %v680 = vpop.f32.mrf.mxu0
        %v681 = vadd.f32 0.0, %v680
        %v682 = vpop.f32.mrf.mxu0
        %683 = vmatprep.mubr.f32.mxu0 0.0
        %684 = vmatmul.mubr.f32.gmra.mxu0 %v508
        %v685 = vpop.f32.mrf.mxu0
        %v686 = vadd.f32 0.0, %v685
        %v687 = vpop.f32.mrf.mxu0
        %688 = vmatprep.mubr.f32.mxu0 0.0
        %689 = vmatmul.mubr.f32.gmra.mxu0 %v511
        %v690 = vpop.f32.mrf.mxu0
        %v691 = vadd.f32 0.0, %v690
        %v692 = vpop.f32.mrf.mxu0
        %693 = vmatprep.mubr.f32.mxu0 0.0
        %694 = vmatmul.mubr.f32.gmra.mxu0 %v514
        %v695 = vpop.f32.mrf.mxu0
        %v696 = vadd.f32 0.0, %v695
        %v697 = vpop.f32.mrf.mxu0
        %698 = vmatprep.mubr.f32.mxu0 0.0
        %699 = vmatmul.mubr.f32.gmra.mxu0 %v517
        %v700 = vpop.f32.mrf.mxu0
        %v701 = vadd.f32 0.0, %v700
        %v702 = vpop.f32.mrf.mxu0
        %703 = vmatprep.mubr.f32.mxu0 0.0
        %704 = vmatmul.mubr.f32.gmra.mxu0 %v520
        %v705 = vpop.f32.mrf.mxu0
        %v706 = vadd.f32 0.0, %v705
        %v707 = vpop.f32.mrf.mxu0
        %708 = vmatprep.mubr.f32.mxu0 0.0
        %709 = vmatmul.mubr.f32.gmra.mxu0 %v523
        %v710 = vpop.f32.mrf.mxu0
        %v711 = vadd.f32 0.0, %v710
        %v712 = vpop.f32.mrf.mxu0
        %713 = vmatprep.mubr.f32.mxu0 0.0
        %714 = vmatmul.mubr.f32.gmra.mxu0 %v526
        %v715 = vpop.f32.mrf.mxu0
        %v716 = vadd.f32 0.0, %v715
        %v717 = vpop.f32.mrf.mxu0
        %718 = vmatprep.mubr.f32.mxu0 0.0
        %719 = vmatmul.mubr.f32.gmra.mxu0 %v529
        %v720 = vpop.f32.mrf.mxu0
        %v721 = vadd.f32 0.0, %v720
        %v722 = vpop.f32.mrf.mxu0
        %723 = vmatprep.mubr.f32.mxu0 0.0
        %724 = vmatmul.mubr.f32.gmra.mxu0 %v532
        %v725 = vpop.f32.mrf.mxu0
        %v726 = vadd.f32 0.0, %v725
        %v727 = vpop.f32.mrf.mxu0
        %728 = vmatprep.mubr.f32.mxu0 0.0
        %729 = vmatmul.mubr.f32.gmra.mxu0 %v535
        %v730 = vpop.f32.mrf.mxu0
        %v731 = vadd.f32 0.0, %v730
        %v732 = vpop.f32.mrf.mxu0
        %733 = vmatprep.mubr.f32.mxu0 0.0
        %734 = vmatmul.mubr.f32.gmra.mxu0 %v538
        %v735 = vpop.f32.mrf.mxu0
        %v736 = vadd.f32 0.0, %v735
        %v737 = vpop.f32.mrf.mxu0
        %738 = vmatprep.mubr.f32.mxu0 0.0
        %739 = vmatmul.mubr.f32.gmra.mxu0 %v541
        %v740 = vpop.f32.mrf.mxu0
        %v741 = vadd.f32 0.0, %v740
        %v742 = vpop.f32.mrf.mxu0
        %743 = vmatprep.mubr.f32.mxu0 0.0
        %744 = vmatmul.mubr.f32.gmra.mxu0 %v544
        %v745 = vpop.f32.mrf.mxu0
        %v746 = vadd.f32 0.0, %v745
        %v747 = vpop.f32.mrf.mxu0
        %748 = vmatprep.mubr.f32.mxu0 0.0
        %749 = vmatmul.mubr.f32.gmra.mxu0 %v547
        %v750 = vpop.f32.mrf.mxu0
        %v751 = vadd.f32 0.0, %v750
        %v752 = vpop.f32.mrf.mxu0
        %753 = vmatprep.mubr.f32.mxu0 0.0
        %754 = vmatmul.mubr.f32.gmra.mxu0 %v550
        %v755 = vpop.f32.mrf.mxu0
        %v756 = vadd.f32 0.0, %v755
        %v757 = vpop.f32.mrf.mxu0
        %758 = vmatprep.mubr.f32.mxu0 0.0
        %759 = vmatmul.mubr.f32.gmra.mxu0 %v553
        %v760 = vpop.f32.mrf.mxu0
        %v761 = vadd.f32 0.0, %v760
        %v762 = vpop.f32.mrf.mxu0
        %763 = vmatprep.mubr.f32.mxu0 0.0
        %764 = vmatmul.mubr.f32.gmra.mxu0 %v556
        %v765 = vpop.f32.mrf.mxu0
        %v766 = vadd.f32 0.0, %v765
        %v767 = vpop.f32.mrf.mxu0
        %768 = vmatprep.mubr.f32.mxu0 0.0
        %769 = vmatmul.mubr.f32.gmra.mxu0 %v559
        %v770 = vpop.f32.mrf.mxu0
        %v771 = vadd.f32 0.0, %v770
        %v772 = vpop.f32.mrf.mxu0
        %773 = vmatprep.mubr.f32.mxu0 0.0
        %774 = vmatmul.mubr.f32.gmra.mxu0 %v562
        %v775 = vpop.f32.mrf.mxu0
        %v776 = vadd.f32 0.0, %v775
        %v777 = vpop.f32.mrf.mxu0
        %778 = vmatprep.mubr.f32.mxu0 0.0
        %779 = vmatmul.mubr.f32.gmra.mxu0 %v565
        %v780 = vpop.f32.mrf.mxu0
        %v781 = vadd.f32 0.0, %v780
        %v782 = vpop.f32.mrf.mxu0
        %783 = vmatprep.mubr.f32.mxu0 0.0
        %784 = vmatmul.mubr.f32.gmra.mxu0 %v568
        %v785 = vpop.f32.mrf.mxu0
        %v786 = vadd.f32 0.0, %v785
        %v787 = vpop.f32.mrf.mxu0
        %788 = vmatprep.mubr.f32.mxu0 0.0
        %789 = vmatmul.mubr.f32.gmra.mxu0 %v571
        %v790 = vpop.f32.mrf.mxu0
        %v791 = vadd.f32 0.0, %v790
        %v792 = vpop.f32.mrf.mxu0
        %793 = vmatprep.mubr.f32.mxu0 0.0
        %794 = vmatmul.mubr.f32.gmra.mxu0 %v574
        %v795 = vpop.f32.mrf.mxu0
        %v796 = vadd.f32 0.0, %v795
        %v797 = vpop.f32.mrf.mxu0
        %798 = vmatprep.mubr.f32.mxu0 0.0
        %799 = vmatmul.mubr.f32.gmra.mxu0 %v577
        %v800 = vpop.f32.mrf.mxu0
        %v801 = vadd.f32 0.0, %v800
        %v802 = vpop.f32.mrf.mxu0
        %803 = vdwg.mxu0
        %804 = vst.msk [vmem:[#allocation2] sm:$0xff] %vm482, 0.0
        %805 = vst.msk [vmem:[#allocation2 + $0x8] sm:$0xff] %vm482, 0.0
        %806 = vst.msk [vmem:[#allocation2 + $0x10] sm:$0xff] %vm482, 0.0
        %807 = vst.msk [vmem:[#allocation2 + $0x18] sm:$0xff] %vm482, 0.0
        %808 = vst.msk [vmem:[#allocation2 + $0x20] sm:$0xff] %vm482, 0.0
        %809 = vst.msk [vmem:[#allocation2 + $0x28] sm:$0xff] %vm482, 0.0
        %810 = vst.msk [vmem:[#allocation2 + $0x30] sm:$0xff] %vm482, 0.0
        %811 = vst.msk [vmem:[#allocation2 + $0x38] sm:$0xff] %vm482, 0.0
        %812 = vst.msk [vmem:[#allocation2 + $0x40] sm:$0xff] %vm482, 0.0
        %813 = vst.msk [vmem:[#allocation2 + $0x48] sm:$0xff] %vm482, 0.0
        %814 = vst.msk [vmem:[#allocation2 + $0x50] sm:$0xff] %vm482, 0.0
        %815 = vst.msk [vmem:[#allocation2 + $0x58] sm:$0xff] %vm482, 0.0
        %816 = vst.msk [vmem:[#allocation2 + $0x60] sm:$0xff] %vm482, 0.0
        %817 = vst.msk [vmem:[#allocation2 + $0x68] sm:$0xff] %vm482, 0.0
        %818 = vst.msk [vmem:[#allocation2 + $0x70] sm:$0xff] %vm482, 0.0
        %819 = vst.msk [vmem:[#allocation2 + $0x78] sm:$0xff] %vm482, 0.0
        %820 = vst.msk [vmem:[#allocation2 + $0x80] sm:$0xff] %vm482, 0.0
        %821 = vst.msk [vmem:[#allocation2 + $0x88] sm:$0xff] %vm482, 0.0
        %822 = vst.msk [vmem:[#allocation2 + $0x90] sm:$0xff] %vm482, 0.0
        %823 = vst.msk [vmem:[#allocation2 + $0x98] sm:$0xff] %vm482, 0.0
        %824 = vst.msk [vmem:[#allocation2 + $0xa0] sm:$0xff] %vm482, 0.0
        %825 = vst.msk [vmem:[#allocation2 + $0xa8] sm:$0xff] %vm482, 0.0
        %826 = vst.msk [vmem:[#allocation2 + $0xb0] sm:$0xff] %vm482, 0.0
        %827 = vst.msk [vmem:[#allocation2 + $0xb8] sm:$0xff] %vm482, 0.0
        %828 = vst.msk [vmem:[#allocation2 + $0xc0] sm:$0xff] %vm482, 0.0
        %829 = vst.msk [vmem:[#allocation2 + $0xc8] sm:$0xff] %vm482, 0.0
        %830 = vst.msk [vmem:[#allocation2 + $0xd0] sm:$0xff] %vm482, 0.0
        %831 = vst.msk [vmem:[#allocation2 + $0xd8] sm:$0xff] %vm482, 0.0
        %832 = vst.msk [vmem:[#allocation2 + $0xe0] sm:$0xff] %vm482, 0.0
        %833 = vst.msk [vmem:[#allocation2 + $0xe8] sm:$0xff] %vm482, 0.0
        %834 = vst.msk [vmem:[#allocation2 + $0xf0] sm:$0xff] %vm482, 0.0
        %835 = vst.msk [vmem:[#allocation2 + $0xf8] sm:$0xff] %vm482, 0.0
        %836 = vst.msk [vmem:[#allocation2 + $0x100] sm:$0xff] %vm482, 0.0
        %837 = vst.msk [vmem:[#allocation2 + $0x108] sm:$0xff] %vm482, 0.0
        %838 = vst.msk [vmem:[#allocation2 + $0x110] sm:$0xff] %vm482, 0.0
        %839 = vst.msk [vmem:[#allocation2 + $0x118] sm:$0xff] %vm482, 0.0
        %840 = vst.msk [vmem:[#allocation2 + $0x120] sm:$0xff] %vm482, 0.0
        %841 = vst.msk [vmem:[#allocation2 + $0x128] sm:$0xff] %vm482, 0.0
        %842 = vst.msk [vmem:[#allocation2 + $0x130] sm:$0xff] %vm482, 0.0
        %843 = vst.msk [vmem:[#allocation2 + $0x138] sm:$0xff] %vm482, 0.0
        %844 = vst.msk [vmem:[#allocation2 + $0x140] sm:$0xff] %vm482, 0.0
        %845 = vst.msk [vmem:[#allocation2 + $0x148] sm:$0xff] %vm482, 0.0
        %846 = vst.msk [vmem:[#allocation2 + $0x150] sm:$0xff] %vm482, 0.0
        %847 = vst.msk [vmem:[#allocation2 + $0x158] sm:$0xff] %vm482, 0.0
        %848 = vst.msk [vmem:[#allocation2 + $0x160] sm:$0xff] %vm482, 0.0
        %849 = vst.msk [vmem:[#allocation2 + $0x168] sm:$0xff] %vm482, 0.0
        %850 = vst.msk [vmem:[#allocation2 + $0x170] sm:$0xff] %vm482, 0.0
        %851 = vst.msk [vmem:[#allocation2 + $0x178] sm:$0xff] %vm482, 0.0
        %852 = vst.msk [vmem:[#allocation2 + $0x180] sm:$0xff] %vm482, 0.0
        %853 = vst.msk [vmem:[#allocation2 + $0x188] sm:$0xff] %vm482, 0.0
        %854 = vst.msk [vmem:[#allocation2 + $0x190] sm:$0xff] %vm482, 0.0
        %855 = vst.msk [vmem:[#allocation2 + $0x198] sm:$0xff] %vm482, 0.0
        %856 = vst.msk [vmem:[#allocation2 + $0x1a0] sm:$0xff] %vm482, 0.0
        %857 = vst.msk [vmem:[#allocation2 + $0x1a8] sm:$0xff] %vm482, 0.0
        %858 = vst.msk [vmem:[#allocation2 + $0x1b0] sm:$0xff] %vm482, 0.0
        %859 = vst.msk [vmem:[#allocation2 + $0x1b8] sm:$0xff] %vm482, 0.0
        %860 = vst.msk [vmem:[#allocation2 + $0x1c0] sm:$0xff] %vm482, 0.0
        %861 = vst.msk [vmem:[#allocation2 + $0x1c8] sm:$0xff] %vm482, 0.0
        %862 = vst.msk [vmem:[#allocation2 + $0x1d0] sm:$0xff] %vm482, 0.0
        %863 = vst.msk [vmem:[#allocation2 + $0x1d8] sm:$0xff] %vm482, 0.0
        %864 = vst.msk [vmem:[#allocation2 + $0x1e0] sm:$0xff] %vm482, 0.0
        %865 = vst.msk [vmem:[#allocation2 + $0x1e8] sm:$0xff] %vm482, 0.0
        %866 = vst.msk [vmem:[#allocation2 + $0x1f0] sm:$0xff] %vm482, 0.0
        %867 = vst.msk [vmem:[#allocation2 + $0x1f8] sm:$0xff] %vm482, 0.0
        %868 = vst.msk [vmem:[#allocation2 + $0x200] sm:$0xff] %vm482, 0.0
        %869 = vst.msk [vmem:[#allocation2 + $0x208] sm:$0xff] %vm482, 0.0
        %870 = vst.msk [vmem:[#allocation2 + $0x210] sm:$0xff] %vm482, 0.0
        %871 = vst.msk [vmem:[#allocation2 + $0x218] sm:$0xff] %vm482, 0.0
        %872 = vst.msk [vmem:[#allocation2 + $0x220] sm:$0xff] %vm482, 0.0
        %873 = vst.msk [vmem:[#allocation2 + $0x228] sm:$0xff] %vm482, 0.0
        %874 = vst.msk [vmem:[#allocation2 + $0x230] sm:$0xff] %vm482, 0.0
        %875 = vst.msk [vmem:[#allocation2 + $0x238] sm:$0xff] %vm482, 0.0
        %s876 = scalar_lea.vmem [#allocation2], 32
        %877 = vst.msk [vmem:[%s876 + $0x8] sm:$0xff] %vm482, %v646
        %878 = vst.msk [vmem:[%s876 + $0x10] sm:$0xff] %vm482, %v651
        %879 = vst.msk [vmem:[%s876 + $0x28] sm:$0xff] %vm482, %v656
        %880 = vst.msk [vmem:[%s876 + $0x30] sm:$0xff] %vm482, %v661
        %881 = vst.msk [vmem:[%s876 + $0x48] sm:$0xff] %vm482, %v666
        %882 = vst.msk [vmem:[%s876 + $0x50] sm:$0xff] %vm482, %v671
        %883 = vst.msk [vmem:[%s876 + $0x68] sm:$0xff] %vm482, %v676
        %884 = vst.msk [vmem:[%s876 + $0x70] sm:$0xff] %vm482, %v681
        %885 = vst.msk [vmem:[%s876 + $0x88] sm:$0xff] %vm482, %v686
        %886 = vst.msk [vmem:[%s876 + $0x90] sm:$0xff] %vm482, %v691
        %887 = vst.msk [vmem:[%s876 + $0xa8] sm:$0xff] %vm482, %v696
        %888 = vst.msk [vmem:[%s876 + $0xb0] sm:$0xff] %vm482, %v701
        %889 = vst.msk [vmem:[%s876 + $0xc8] sm:$0xff] %vm482, %v706
        %890 = vst.msk [vmem:[%s876 + $0xd0] sm:$0xff] %vm482, %v711
        %891 = vst.msk [vmem:[%s876 + $0xe8] sm:$0xff] %vm482, %v716
        %892 = vst.msk [vmem:[%s876 + $0xf0] sm:$0xff] %vm482, %v721
        %893 = vst.msk [vmem:[%s876 + $0x108] sm:$0xff] %vm482, %v726
        %894 = vst.msk [vmem:[%s876 + $0x110] sm:$0xff] %vm482, %v731
        %895 = vst.msk [vmem:[%s876 + $0x128] sm:$0xff] %vm482, %v736
        %896 = vst.msk [vmem:[%s876 + $0x130] sm:$0xff] %vm482, %v741
        %897 = vst.msk [vmem:[%s876 + $0x148] sm:$0xff] %vm482, %v746
        %898 = vst.msk [vmem:[%s876 + $0x150] sm:$0xff] %vm482, %v751
        %899 = vst.msk [vmem:[%s876 + $0x168] sm:$0xff] %vm482, %v756
        %900 = vst.msk [vmem:[%s876 + $0x170] sm:$0xff] %vm482, %v761
        %901 = vst.msk [vmem:[%s876 + $0x188] sm:$0xff] %vm482, %v766
        %902 = vst.msk [vmem:[%s876 + $0x190] sm:$0xff] %vm482, %v771
        %903 = vst.msk [vmem:[%s876 + $0x1a8] sm:$0xff] %vm482, %v776
        %904 = vst.msk [vmem:[%s876 + $0x1b0] sm:$0xff] %vm482, %v781
        %905 = vst.msk [vmem:[%s876 + $0x1c8] sm:$0xff] %vm482, %v786
        %906 = vst.msk [vmem:[%s876 + $0x1d0] sm:$0xff] %vm482, %v791
        %907 = vst.msk [vmem:[%s876 + $0x1e8] sm:$0xff] %vm482, %v796
        %908 = vst.msk [vmem:[%s876 + $0x1f0] sm:$0xff] %vm482, %v801
        %v909 = vld [vmem:[#allocation2 + $0x7] sm:$0xff]
        %v910 = vld [vmem:[#allocation2 + $0xf] sm:$0xff]
        %v911 = vld [vmem:[#allocation2 + $0x27] sm:$0xff]
        %v912 = vld [vmem:[#allocation2 + $0x2f] sm:$0xff]
        %v913 = vld [vmem:[#allocation2 + $0x47] sm:$0xff]
        %v914 = vld [vmem:[#allocation2 + $0x4f] sm:$0xff]
        %v915 = vld [vmem:[#allocation2 + $0x67] sm:$0xff]
        %v916 = vld [vmem:[#allocation2 + $0x6f] sm:$0xff]
        %v917 = vld [vmem:[#allocation2 + $0x87] sm:$0xff]
        %v918 = vld [vmem:[#allocation2 + $0x8f] sm:$0xff]
        %v919 = vld [vmem:[#allocation2 + $0xa7] sm:$0xff]
        %v920 = vld [vmem:[#allocation2 + $0xaf] sm:$0xff]
        %v921 = vld [vmem:[#allocation2 + $0xc7] sm:$0xff]
        %v922 = vld [vmem:[#allocation2 + $0xcf] sm:$0xff]
        %v923 = vld [vmem:[#allocation2 + $0xe7] sm:$0xff]
        %v924 = vld [vmem:[#allocation2 + $0xef] sm:$0xff]
        %v925 = vld [vmem:[#allocation2 + $0x107] sm:$0xff]
        %v926 = vld [vmem:[#allocation2 + $0x10f] sm:$0xff]
        %v927 = vld [vmem:[#allocation2 + $0x127] sm:$0xff]
        %v928 = vld [vmem:[#allocation2 + $0x12f] sm:$0xff]
        %v929 = vld [vmem:[#allocation2 + $0x147] sm:$0xff]
        %v930 = vld [vmem:[#allocation2 + $0x14f] sm:$0xff]
        %v931 = vld [vmem:[#allocation2 + $0x167] sm:$0xff]
        %v932 = vld [vmem:[#allocation2 + $0x16f] sm:$0xff]
        %v933 = vld [vmem:[#allocation2 + $0x187] sm:$0xff]
        %v934 = vld [vmem:[#allocation2 + $0x18f] sm:$0xff]
        %v935 = vld [vmem:[#allocation2 + $0x1a7] sm:$0xff]
        %v936 = vld [vmem:[#allocation2 + $0x1af] sm:$0xff]
        %v937 = vld [vmem:[#allocation2 + $0x1c7] sm:$0xff]
        %v938 = vld [vmem:[#allocation2 + $0x1cf] sm:$0xff]
        %v939 = vld [vmem:[#allocation2 + $0x1e7] sm:$0xff]
        %v940 = vld [vmem:[#allocation2 + $0x1ef] sm:$0xff]
        %v941 = vld [vmem:[#allocation8] sm:$0x1]
        %v942 = vlaneseq
        %v943 = vshrl.u32 %v942, 7
        %v944 = vsub.s32 0, %v943
        %v945 = vrot.slane %v941, %v944
        %v946 = vmul.f32 %v909, %v945
        %v947 = vmul.f32 %v910, %v945
        %v948 = vmul.f32 %v911, %v945
        %v949 = vmul.f32 %v912, %v945
        %v950 = vmul.f32 %v913, %v945
        %v951 = vmul.f32 %v914, %v945
        %v952 = vmul.f32 %v915, %v945
        %v953 = vmul.f32 %v916, %v945
        %v954 = vmul.f32 %v917, %v945
        %v955 = vmul.f32 %v918, %v945
        %v956 = vmul.f32 %v919, %v945
        %v957 = vmul.f32 %v920, %v945
        %v958 = vmul.f32 %v921, %v945
        %v959 = vmul.f32 %v922, %v945
        %v960 = vmul.f32 %v923, %v945
        %v961 = vmul.f32 %v924, %v945
        %v962 = vmul.f32 %v925, %v945
        %v963 = vmul.f32 %v926, %v945
        %v964 = vmul.f32 %v927, %v945
        %v965 = vmul.f32 %v928, %v945
        %v966 = vmul.f32 %v929, %v945
        %v967 = vmul.f32 %v930, %v945
        %v968 = vmul.f32 %v931, %v945
        %v969 = vmul.f32 %v932, %v945
        %v970 = vmul.f32 %v933, %v945
        %v971 = vmul.f32 %v934, %v945
        %v972 = vmul.f32 %v935, %v945
        %v973 = vmul.f32 %v936, %v945
        %v974 = vmul.f32 %v937, %v945
        %v975 = vmul.f32 %v938, %v945
        %v976 = vmul.f32 %v939, %v945
        %v977 = vmul.f32 %v940, %v945
        %v978 = vadd.f32 %v946, 0.0
        %v979 = vadd.f32 %v947, 0.0
        %v980 = vadd.f32 %v948, 0.0
        %v981 = vadd.f32 %v949, 0.0
        %v982 = vadd.f32 %v950, 0.0
        %v983 = vadd.f32 %v951, 0.0
        %v984 = vadd.f32 %v952, 0.0
        %v985 = vadd.f32 %v953, 0.0
        %v986 = vadd.f32 %v954, 0.0
        %v987 = vadd.f32 %v955, 0.0
        %v988 = vadd.f32 %v956, 0.0
        %v989 = vadd.f32 %v957, 0.0
        %v990 = vadd.f32 %v958, 0.0
        %v991 = vadd.f32 %v959, 0.0
        %v992 = vadd.f32 %v960, 0.0
        %v993 = vadd.f32 %v961, 0.0
        %v994 = vadd.f32 %v962, 0.0
        %v995 = vadd.f32 %v963, 0.0
        %v996 = vadd.f32 %v964, 0.0
        %v997 = vadd.f32 %v965, 0.0
        %v998 = vadd.f32 %v966, 0.0
        %v999 = vadd.f32 %v967, 0.0
        %v1000 = vadd.f32 %v968, 0.0
        %v1001 = vadd.f32 %v969, 0.0
        %v1002 = vadd.f32 %v970, 0.0
        %v1003 = vadd.f32 %v971, 0.0
        %v1004 = vadd.f32 %v972, 0.0
        %v1005 = vadd.f32 %v973, 0.0
        %v1006 = vadd.f32 %v974, 0.0
        %v1007 = vadd.f32 %v975, 0.0
        %v1008 = vadd.f32 %v976, 0.0
        %v1009 = vadd.f32 %v977, 0.0
        %v1010 = vld [vmem:[#allocation2 + $0x8] sm:$0xff]
        %v1011 = vld [vmem:[#allocation2 + $0x10] sm:$0xff]
        %v1012 = vld [vmem:[#allocation2 + $0x28] sm:$0xff]
        %v1013 = vld [vmem:[#allocation2 + $0x30] sm:$0xff]
        %v1014 = vld [vmem:[#allocation2 + $0x48] sm:$0xff]
        %v1015 = vld [vmem:[#allocation2 + $0x50] sm:$0xff]
        %v1016 = vld [vmem:[#allocation2 + $0x68] sm:$0xff]
        %v1017 = vld [vmem:[#allocation2 + $0x70] sm:$0xff]
        %v1018 = vld [vmem:[#allocation2 + $0x88] sm:$0xff]
        %v1019 = vld [vmem:[#allocation2 + $0x90] sm:$0xff]
        %v1020 = vld [vmem:[#allocation2 + $0xa8] sm:$0xff]
        %v1021 = vld [vmem:[#allocation2 + $0xb0] sm:$0xff]
        %v1022 = vld [vmem:[#allocation2 + $0xc8] sm:$0xff]
        %v1023 = vld [vmem:[#allocation2 + $0xd0] sm:$0xff]
        %v1024 = vld [vmem:[#allocation2 + $0xe8] sm:$0xff]
        %v1025 = vld [vmem:[#allocation2 + $0xf0] sm:$0xff]
        %v1026 = vld [vmem:[#allocation2 + $0x108] sm:$0xff]
        %v1027 = vld [vmem:[#allocation2 + $0x110] sm:$0xff]
        %v1028 = vld [vmem:[#allocation2 + $0x128] sm:$0xff]
        %v1029 = vld [vmem:[#allocation2 + $0x130] sm:$0xff]
        %v1030 = vld [vmem:[#allocation2 + $0x148] sm:$0xff]
        %v1031 = vld [vmem:[#allocation2 + $0x150] sm:$0xff]
        %v1032 = vld [vmem:[#allocation2 + $0x168] sm:$0xff]
        %v1033 = vld [vmem:[#allocation2 + $0x170] sm:$0xff]
        %v1034 = vld [vmem:[#allocation2 + $0x188] sm:$0xff]
        %v1035 = vld [vmem:[#allocation2 + $0x190] sm:$0xff]
        %v1036 = vld [vmem:[#allocation2 + $0x1a8] sm:$0xff]
        %v1037 = vld [vmem:[#allocation2 + $0x1b0] sm:$0xff]
        %v1038 = vld [vmem:[#allocation2 + $0x1c8] sm:$0xff]
        %v1039 = vld [vmem:[#allocation2 + $0x1d0] sm:$0xff]
        %v1040 = vld [vmem:[#allocation2 + $0x1e8] sm:$0xff]
        %v1041 = vld [vmem:[#allocation2 + $0x1f0] sm:$0xff]
        %v1042 = vld [vmem:[#allocation8 + $0x1] sm:$0x1]
        %v1043 = vlaneseq
        %v1044 = vshrl.u32 %v1043, 7
        %v1045 = vsub.s32 0, %v1044
        %v1046 = vrot.slane %v1042, %v1045
        %v1047 = vmul.f32 %v1010, %v1046
        %v1048 = vmul.f32 %v1011, %v1046
        %v1049 = vmul.f32 %v1012, %v1046
        %v1050 = vmul.f32 %v1013, %v1046
        %v1051 = vmul.f32 %v1014, %v1046
        %v1052 = vmul.f32 %v1015, %v1046
        %v1053 = vmul.f32 %v1016, %v1046
        %v1054 = vmul.f32 %v1017, %v1046
        %v1055 = vmul.f32 %v1018, %v1046
        %v1056 = vmul.f32 %v1019, %v1046
        %v1057 = vmul.f32 %v1020, %v1046
        %v1058 = vmul.f32 %v1021, %v1046
        %v1059 = vmul.f32 %v1022, %v1046
        %v1060 = vmul.f32 %v1023, %v1046
        %v1061 = vmul.f32 %v1024, %v1046
        %v1062 = vmul.f32 %v1025, %v1046
        %v1063 = vmul.f32 %v1026, %v1046
        %v1064 = vmul.f32 %v1027, %v1046
        %v1065 = vmul.f32 %v1028, %v1046
        %v1066 = vmul.f32 %v1029, %v1046
        %v1067 = vmul.f32 %v1030, %v1046
        %v1068 = vmul.f32 %v1031, %v1046
        %v1069 = vmul.f32 %v1032, %v1046
        %v1070 = vmul.f32 %v1033, %v1046
        %v1071 = vmul.f32 %v1034, %v1046
        %v1072 = vmul.f32 %v1035, %v1046
        %v1073 = vmul.f32 %v1036, %v1046
        %v1074 = vmul.f32 %v1037, %v1046
        %v1075 = vmul.f32 %v1038, %v1046
        %v1076 = vmul.f32 %v1039, %v1046
        %v1077 = vmul.f32 %v1040, %v1046
        %v1078 = vmul.f32 %v1041, %v1046
        %v1079 = vadd.f32 %v978, %v1047
        %v1080 = vadd.f32 %v979, %v1048
        %v1081 = vadd.f32 %v980, %v1049
        %v1082 = vadd.f32 %v981, %v1050
        %v1083 = vadd.f32 %v982, %v1051
        %v1084 = vadd.f32 %v983, %v1052
        %v1085 = vadd.f32 %v984, %v1053
        %v1086 = vadd.f32 %v985, %v1054
        %v1087 = vadd.f32 %v986, %v1055
        %v1088 = vadd.f32 %v987, %v1056
        %v1089 = vadd.f32 %v988, %v1057
        %v1090 = vadd.f32 %v989, %v1058
        %v1091 = vadd.f32 %v990, %v1059
        %v1092 = vadd.f32 %v991, %v1060
        %v1093 = vadd.f32 %v992, %v1061
        %v1094 = vadd.f32 %v993, %v1062
        %v1095 = vadd.f32 %v994, %v1063
        %v1096 = vadd.f32 %v995, %v1064
        %v1097 = vadd.f32 %v996, %v1065
        %v1098 = vadd.f32 %v997, %v1066
        %v1099 = vadd.f32 %v998, %v1067
        %v1100 = vadd.f32 %v999, %v1068
        %v1101 = vadd.f32 %v1000, %v1069
        %v1102 = vadd.f32 %v1001, %v1070
        %v1103 = vadd.f32 %v1002, %v1071
        %v1104 = vadd.f32 %v1003, %v1072
        %v1105 = vadd.f32 %v1004, %v1073
        %v1106 = vadd.f32 %v1005, %v1074
        %v1107 = vadd.f32 %v1006, %v1075
        %v1108 = vadd.f32 %v1007, %v1076
        %v1109 = vadd.f32 %v1008, %v1077
        %v1110 = vadd.f32 %v1009, %v1078
        %v1111 = vld [vmem:[#allocation2 + $0x9] sm:$0xff]
        %v1112 = vld [vmem:[#allocation2 + $0x11] sm:$0xff]
        %v1113 = vld [vmem:[#allocation2 + $0x29] sm:$0xff]
        %v1114 = vld [vmem:[#allocation2 + $0x31] sm:$0xff]
        %v1115 = vld [vmem:[#allocation2 + $0x49] sm:$0xff]
        %v1116 = vld [vmem:[#allocation2 + $0x51] sm:$0xff]
        %v1117 = vld [vmem:[#allocation2 + $0x69] sm:$0xff]
        %v1118 = vld [vmem:[#allocation2 + $0x71] sm:$0xff]
        %v1119 = vld [vmem:[#allocation2 + $0x89] sm:$0xff]
        %v1120 = vld [vmem:[#allocation2 + $0x91] sm:$0xff]
        %v1121 = vld [vmem:[#allocation2 + $0xa9] sm:$0xff]
        %v1122 = vld [vmem:[#allocation2 + $0xb1] sm:$0xff]
        %v1123 = vld [vmem:[#allocation2 + $0xc9] sm:$0xff]
        %v1124 = vld [vmem:[#allocation2 + $0xd1] sm:$0xff]
        %v1125 = vld [vmem:[#allocation2 + $0xe9] sm:$0xff]
        %v1126 = vld [vmem:[#allocation2 + $0xf1] sm:$0xff]
        %v1127 = vld [vmem:[#allocation2 + $0x109] sm:$0xff]
        %v1128 = vld [vmem:[#allocation2 + $0x111] sm:$0xff]
        %v1129 = vld [vmem:[#allocation2 + $0x129] sm:$0xff]
        %v1130 = vld [vmem:[#allocation2 + $0x131] sm:$0xff]
        %v1131 = vld [vmem:[#allocation2 + $0x149] sm:$0xff]
        %v1132 = vld [vmem:[#allocation2 + $0x151] sm:$0xff]
        %v1133 = vld [vmem:[#allocation2 + $0x169] sm:$0xff]
        %v1134 = vld [vmem:[#allocation2 + $0x171] sm:$0xff]
        %v1135 = vld [vmem:[#allocation2 + $0x189] sm:$0xff]
        %v1136 = vld [vmem:[#allocation2 + $0x191] sm:$0xff]
        %v1137 = vld [vmem:[#allocation2 + $0x1a9] sm:$0xff]
        %v1138 = vld [vmem:[#allocation2 + $0x1b1] sm:$0xff]
        %v1139 = vld [vmem:[#allocation2 + $0x1c9] sm:$0xff]
        %v1140 = vld [vmem:[#allocation2 + $0x1d1] sm:$0xff]
        %v1141 = vld [vmem:[#allocation2 + $0x1e9] sm:$0xff]
        %v1142 = vld [vmem:[#allocation2 + $0x1f1] sm:$0xff]
        %v1143 = vld [vmem:[#allocation8 + $0x2] sm:$0x1]
        %v1144 = vlaneseq
        %v1145 = vshrl.u32 %v1144, 7
        %v1146 = vsub.s32 0, %v1145
        %v1147 = vrot.slane %v1143, %v1146
        %v1148 = vmul.f32 %v1111, %v1147
        %v1149 = vmul.f32 %v1112, %v1147
        %v1150 = vmul.f32 %v1113, %v1147
        %v1151 = vmul.f32 %v1114, %v1147
        %v1152 = vmul.f32 %v1115, %v1147
        %v1153 = vmul.f32 %v1116, %v1147
        %v1154 = vmul.f32 %v1117, %v1147
        %v1155 = vmul.f32 %v1118, %v1147
        %v1156 = vmul.f32 %v1119, %v1147
        %v1157 = vmul.f32 %v1120, %v1147
        %v1158 = vmul.f32 %v1121, %v1147
        %v1159 = vmul.f32 %v1122, %v1147
        %v1160 = vmul.f32 %v1123, %v1147
        %v1161 = vmul.f32 %v1124, %v1147
        %v1162 = vmul.f32 %v1125, %v1147
        %v1163 = vmul.f32 %v1126, %v1147
        %v1164 = vmul.f32 %v1127, %v1147
        %v1165 = vmul.f32 %v1128, %v1147
        %v1166 = vmul.f32 %v1129, %v1147
        %v1167 = vmul.f32 %v1130, %v1147
        %v1168 = vmul.f32 %v1131, %v1147
        %v1169 = vmul.f32 %v1132, %v1147
        %v1170 = vmul.f32 %v1133, %v1147
        %v1171 = vmul.f32 %v1134, %v1147
        %v1172 = vmul.f32 %v1135, %v1147
        %v1173 = vmul.f32 %v1136, %v1147
        %v1174 = vmul.f32 %v1137, %v1147
        %v1175 = vmul.f32 %v1138, %v1147
        %v1176 = vmul.f32 %v1139, %v1147
        %v1177 = vmul.f32 %v1140, %v1147
        %v1178 = vmul.f32 %v1141, %v1147
        %v1179 = vmul.f32 %v1142, %v1147
        %v1180 = vadd.f32 %v1079, %v1148
        %v1181 = vadd.f32 %v1080, %v1149
        %v1182 = vadd.f32 %v1081, %v1150
        %v1183 = vadd.f32 %v1082, %v1151
        %v1184 = vadd.f32 %v1083, %v1152
        %v1185 = vadd.f32 %v1084, %v1153
        %v1186 = vadd.f32 %v1085, %v1154
        %v1187 = vadd.f32 %v1086, %v1155
        %v1188 = vadd.f32 %v1087, %v1156
        %v1189 = vadd.f32 %v1088, %v1157
        %v1190 = vadd.f32 %v1089, %v1158
        %v1191 = vadd.f32 %v1090, %v1159
        %v1192 = vadd.f32 %v1091, %v1160
        %v1193 = vadd.f32 %v1092, %v1161
        %v1194 = vadd.f32 %v1093, %v1162
        %v1195 = vadd.f32 %v1094, %v1163
        %v1196 = vadd.f32 %v1095, %v1164
        %v1197 = vadd.f32 %v1096, %v1165
        %v1198 = vadd.f32 %v1097, %v1166
        %v1199 = vadd.f32 %v1098, %v1167
        %v1200 = vadd.f32 %v1099, %v1168
        %v1201 = vadd.f32 %v1100, %v1169
        %v1202 = vadd.f32 %v1101, %v1170
        %v1203 = vadd.f32 %v1102, %v1171
        %v1204 = vadd.f32 %v1103, %v1172
        %v1205 = vadd.f32 %v1104, %v1173
        %v1206 = vadd.f32 %v1105, %v1174
        %v1207 = vadd.f32 %v1106, %v1175
        %v1208 = vadd.f32 %v1107, %v1176
        %v1209 = vadd.f32 %v1108, %v1177
        %v1210 = vadd.f32 %v1109, %v1178
        %v1211 = vadd.f32 %v1110, %v1179
        %v1212 = vld [vmem:[%s876 + $0x7] sm:$0xff]
        %v1213 = vld [vmem:[%s876 + $0xf] sm:$0xff]
        %v1214 = vld [vmem:[%s876 + $0x27] sm:$0xff]
        %v1215 = vld [vmem:[%s876 + $0x2f] sm:$0xff]
        %v1216 = vld [vmem:[%s876 + $0x47] sm:$0xff]
        %v1217 = vld [vmem:[%s876 + $0x4f] sm:$0xff]
        %v1218 = vld [vmem:[%s876 + $0x67] sm:$0xff]
        %v1219 = vld [vmem:[%s876 + $0x6f] sm:$0xff]
        %v1220 = vld [vmem:[%s876 + $0x87] sm:$0xff]
        %v1221 = vld [vmem:[%s876 + $0x8f] sm:$0xff]
        %v1222 = vld [vmem:[%s876 + $0xa7] sm:$0xff]
        %v1223 = vld [vmem:[%s876 + $0xaf] sm:$0xff]
        %v1224 = vld [vmem:[%s876 + $0xc7] sm:$0xff]
        %v1225 = vld [vmem:[%s876 + $0xcf] sm:$0xff]
        %v1226 = vld [vmem:[%s876 + $0xe7] sm:$0xff]
        %v1227 = vld [vmem:[%s876 + $0xef] sm:$0xff]
        %v1228 = vld [vmem:[%s876 + $0x107] sm:$0xff]
        %v1229 = vld [vmem:[%s876 + $0x10f] sm:$0xff]
        %v1230 = vld [vmem:[%s876 + $0x127] sm:$0xff]
        %v1231 = vld [vmem:[%s876 + $0x12f] sm:$0xff]
        %v1232 = vld [vmem:[%s876 + $0x147] sm:$0xff]
        %v1233 = vld [vmem:[%s876 + $0x14f] sm:$0xff]
        %v1234 = vld [vmem:[%s876 + $0x167] sm:$0xff]
        %v1235 = vld [vmem:[%s876 + $0x16f] sm:$0xff]
        %v1236 = vld [vmem:[%s876 + $0x187] sm:$0xff]
        %v1237 = vld [vmem:[%s876 + $0x18f] sm:$0xff]
        %v1238 = vld [vmem:[%s876 + $0x1a7] sm:$0xff]
        %v1239 = vld [vmem:[%s876 + $0x1af] sm:$0xff]
        %v1240 = vld [vmem:[%s876 + $0x1c7] sm:$0xff]
        %v1241 = vld [vmem:[%s876 + $0x1cf] sm:$0xff]
        %v1242 = vld [vmem:[%s876 + $0x1e7] sm:$0xff]
        %v1243 = vld [vmem:[%s876 + $0x1ef] sm:$0xff]
        %v1244 = vld [vmem:[#allocation8 + $0x3] sm:$0x1]
        %v1245 = vlaneseq
        %v1246 = vshrl.u32 %v1245, 7
        %v1247 = vsub.s32 0, %v1246
        %v1248 = vrot.slane %v1244, %v1247
        %v1249 = vmul.f32 %v1212, %v1248
        %v1250 = vmul.f32 %v1213, %v1248
        %v1251 = vmul.f32 %v1214, %v1248
        %v1252 = vmul.f32 %v1215, %v1248
        %v1253 = vmul.f32 %v1216, %v1248
        %v1254 = vmul.f32 %v1217, %v1248
        %v1255 = vmul.f32 %v1218, %v1248
        %v1256 = vmul.f32 %v1219, %v1248
        %v1257 = vmul.f32 %v1220, %v1248
        %v1258 = vmul.f32 %v1221, %v1248
        %v1259 = vmul.f32 %v1222, %v1248
        %v1260 = vmul.f32 %v1223, %v1248
        %v1261 = vmul.f32 %v1224, %v1248
        %v1262 = vmul.f32 %v1225, %v1248
        %v1263 = vmul.f32 %v1226, %v1248
        %v1264 = vmul.f32 %v1227, %v1248
        %v1265 = vmul.f32 %v1228, %v1248
        %v1266 = vmul.f32 %v1229, %v1248
        %v1267 = vmul.f32 %v1230, %v1248
        %v1268 = vmul.f32 %v1231, %v1248
        %v1269 = vmul.f32 %v1232, %v1248
        %v1270 = vmul.f32 %v1233, %v1248
        %v1271 = vmul.f32 %v1234, %v1248
        %v1272 = vmul.f32 %v1235, %v1248
        %v1273 = vmul.f32 %v1236, %v1248
        %v1274 = vmul.f32 %v1237, %v1248
        %v1275 = vmul.f32 %v1238, %v1248
        %v1276 = vmul.f32 %v1239, %v1248
        %v1277 = vmul.f32 %v1240, %v1248
        %v1278 = vmul.f32 %v1241, %v1248
        %v1279 = vmul.f32 %v1242, %v1248
        %v1280 = vmul.f32 %v1243, %v1248
        %v1281 = vadd.f32 %v1180, %v1249
        %v1282 = vadd.f32 %v1181, %v1250
        %v1283 = vadd.f32 %v1182, %v1251
        %v1284 = vadd.f32 %v1183, %v1252
        %v1285 = vadd.f32 %v1184, %v1253
        %v1286 = vadd.f32 %v1185, %v1254
        %v1287 = vadd.f32 %v1186, %v1255
        %v1288 = vadd.f32 %v1187, %v1256
        %v1289 = vadd.f32 %v1188, %v1257
        %v1290 = vadd.f32 %v1189, %v1258
        %v1291 = vadd.f32 %v1190, %v1259
        %v1292 = vadd.f32 %v1191, %v1260
        %v1293 = vadd.f32 %v1192, %v1261
        %v1294 = vadd.f32 %v1193, %v1262
        %v1295 = vadd.f32 %v1194, %v1263
        %v1296 = vadd.f32 %v1195, %v1264
        %v1297 = vadd.f32 %v1196, %v1265
        %v1298 = vadd.f32 %v1197, %v1266
        %v1299 = vadd.f32 %v1198, %v1267
        %v1300 = vadd.f32 %v1199, %v1268
        %v1301 = vadd.f32 %v1200, %v1269
        %v1302 = vadd.f32 %v1201, %v1270
        %v1303 = vadd.f32 %v1202, %v1271
        %v1304 = vadd.f32 %v1203, %v1272
        %v1305 = vadd.f32 %v1204, %v1273
        %v1306 = vadd.f32 %v1205, %v1274
        %v1307 = vadd.f32 %v1206, %v1275
        %v1308 = vadd.f32 %v1207, %v1276
        %v1309 = vadd.f32 %v1208, %v1277
        %v1310 = vadd.f32 %v1209, %v1278
        %v1311 = vadd.f32 %v1210, %v1279
        %v1312 = vadd.f32 %v1211, %v1280
        %v1313 = vld [vmem:[%s876 + $0x8] sm:$0xff]
        %v1314 = vld [vmem:[%s876 + $0x10] sm:$0xff]
        %v1315 = vld [vmem:[%s876 + $0x28] sm:$0xff]
        %v1316 = vld [vmem:[%s876 + $0x30] sm:$0xff]
        %v1317 = vld [vmem:[%s876 + $0x48] sm:$0xff]
        %v1318 = vld [vmem:[%s876 + $0x50] sm:$0xff]
        %v1319 = vld [vmem:[%s876 + $0x68] sm:$0xff]
        %v1320 = vld [vmem:[%s876 + $0x70] sm:$0xff]
        %v1321 = vld [vmem:[%s876 + $0x88] sm:$0xff]
        %v1322 = vld [vmem:[%s876 + $0x90] sm:$0xff]
        %v1323 = vld [vmem:[%s876 + $0xa8] sm:$0xff]
        %v1324 = vld [vmem:[%s876 + $0xb0] sm:$0xff]
        %v1325 = vld [vmem:[%s876 + $0xc8] sm:$0xff]
        %v1326 = vld [vmem:[%s876 + $0xd0] sm:$0xff]
        %v1327 = vld [vmem:[%s876 + $0xe8] sm:$0xff]
        %v1328 = vld [vmem:[%s876 + $0xf0] sm:$0xff]
        %v1329 = vld [vmem:[%s876 + $0x108] sm:$0xff]
        %v1330 = vld [vmem:[%s876 + $0x110] sm:$0xff]
        %v1331 = vld [vmem:[%s876 + $0x128] sm:$0xff]
        %v1332 = vld [vmem:[%s876 + $0x130] sm:$0xff]
        %v1333 = vld [vmem:[%s876 + $0x148] sm:$0xff]
        %v1334 = vld [vmem:[%s876 + $0x150] sm:$0xff]
        %v1335 = vld [vmem:[%s876 + $0x168] sm:$0xff]
        %v1336 = vld [vmem:[%s876 + $0x170] sm:$0xff]
        %v1337 = vld [vmem:[%s876 + $0x188] sm:$0xff]
        %v1338 = vld [vmem:[%s876 + $0x190] sm:$0xff]
        %v1339 = vld [vmem:[%s876 + $0x1a8] sm:$0xff]
        %v1340 = vld [vmem:[%s876 + $0x1b0] sm:$0xff]
        %v1341 = vld [vmem:[%s876 + $0x1c8] sm:$0xff]
        %v1342 = vld [vmem:[%s876 + $0x1d0] sm:$0xff]
        %v1343 = vld [vmem:[%s876 + $0x1e8] sm:$0xff]
        %v1344 = vld [vmem:[%s876 + $0x1f0] sm:$0xff]
        %v1345 = vld [vmem:[#allocation8 + $0x4] sm:$0x1]
        %v1346 = vlaneseq
        %v1347 = vshrl.u32 %v1346, 7
        %v1348 = vsub.s32 0, %v1347
        %v1349 = vrot.slane %v1345, %v1348
        %v1350 = vmul.f32 %v1313, %v1349
        %v1351 = vmul.f32 %v1314, %v1349
        %v1352 = vmul.f32 %v1315, %v1349
        %v1353 = vmul.f32 %v1316, %v1349
        %v1354 = vmul.f32 %v1317, %v1349
        %v1355 = vmul.f32 %v1318, %v1349
        %v1356 = vmul.f32 %v1319, %v1349
        %v1357 = vmul.f32 %v1320, %v1349
        %v1358 = vmul.f32 %v1321, %v1349
        %v1359 = vmul.f32 %v1322, %v1349
        %v1360 = vmul.f32 %v1323, %v1349
        %v1361 = vmul.f32 %v1324, %v1349
        %v1362 = vmul.f32 %v1325, %v1349
        %v1363 = vmul.f32 %v1326, %v1349
        %v1364 = vmul.f32 %v1327, %v1349
        %v1365 = vmul.f32 %v1328, %v1349
        %v1366 = vmul.f32 %v1329, %v1349
        %v1367 = vmul.f32 %v1330, %v1349
        %v1368 = vmul.f32 %v1331, %v1349
        %v1369 = vmul.f32 %v1332, %v1349
        %v1370 = vmul.f32 %v1333, %v1349
        %v1371 = vmul.f32 %v1334, %v1349
        %v1372 = vmul.f32 %v1335, %v1349
        %v1373 = vmul.f32 %v1336, %v1349
        %v1374 = vmul.f32 %v1337, %v1349
        %v1375 = vmul.f32 %v1338, %v1349
        %v1376 = vmul.f32 %v1339, %v1349
        %v1377 = vmul.f32 %v1340, %v1349
        %v1378 = vmul.f32 %v1341, %v1349
        %v1379 = vmul.f32 %v1342, %v1349
        %v1380 = vmul.f32 %v1343, %v1349
        %v1381 = vmul.f32 %v1344, %v1349
        %v1382 = vadd.f32 %v1281, %v1350
        %v1383 = vadd.f32 %v1282, %v1351
        %v1384 = vadd.f32 %v1283, %v1352
        %v1385 = vadd.f32 %v1284, %v1353
        %v1386 = vadd.f32 %v1285, %v1354
        %v1387 = vadd.f32 %v1286, %v1355
        %v1388 = vadd.f32 %v1287, %v1356
        %v1389 = vadd.f32 %v1288, %v1357
        %v1390 = vadd.f32 %v1289, %v1358
        %v1391 = vadd.f32 %v1290, %v1359
        %v1392 = vadd.f32 %v1291, %v1360
        %v1393 = vadd.f32 %v1292, %v1361
        %v1394 = vadd.f32 %v1293, %v1362
        %v1395 = vadd.f32 %v1294, %v1363
        %v1396 = vadd.f32 %v1295, %v1364
        %v1397 = vadd.f32 %v1296, %v1365
        %v1398 = vadd.f32 %v1297, %v1366
        %v1399 = vadd.f32 %v1298, %v1367
        %v1400 = vadd.f32 %v1299, %v1368
        %v1401 = vadd.f32 %v1300, %v1369
        %v1402 = vadd.f32 %v1301, %v1370
        %v1403 = vadd.f32 %v1302, %v1371
        %v1404 = vadd.f32 %v1303, %v1372
        %v1405 = vadd.f32 %v1304, %v1373
        %v1406 = vadd.f32 %v1305, %v1374
        %v1407 = vadd.f32 %v1306, %v1375
        %v1408 = vadd.f32 %v1307, %v1376
        %v1409 = vadd.f32 %v1308, %v1377
        %v1410 = vadd.f32 %v1309, %v1378
        %v1411 = vadd.f32 %v1310, %v1379
        %v1412 = vadd.f32 %v1311, %v1380
        %v1413 = vadd.f32 %v1312, %v1381
        %v1414 = vld [vmem:[%s876 + $0x9] sm:$0xff]
        %v1415 = vld [vmem:[%s876 + $0x11] sm:$0xff]
        %v1416 = vld [vmem:[%s876 + $0x29] sm:$0xff]
        %v1417 = vld [vmem:[%s876 + $0x31] sm:$0xff]
        %v1418 = vld [vmem:[%s876 + $0x49] sm:$0xff]
        %v1419 = vld [vmem:[%s876 + $0x51] sm:$0xff]
        %v1420 = vld [vmem:[%s876 + $0x69] sm:$0xff]
        %v1421 = vld [vmem:[%s876 + $0x71] sm:$0xff]
        %v1422 = vld [vmem:[%s876 + $0x89] sm:$0xff]
        %v1423 = vld [vmem:[%s876 + $0x91] sm:$0xff]
        %v1424 = vld [vmem:[%s876 + $0xa9] sm:$0xff]
        %v1425 = vld [vmem:[%s876 + $0xb1] sm:$0xff]
        %v1426 = vld [vmem:[%s876 + $0xc9] sm:$0xff]
        %v1427 = vld [vmem:[%s876 + $0xd1] sm:$0xff]
        %v1428 = vld [vmem:[%s876 + $0xe9] sm:$0xff]
        %v1429 = vld [vmem:[%s876 + $0xf1] sm:$0xff]
        %v1430 = vld [vmem:[%s876 + $0x109] sm:$0xff]
        %v1431 = vld [vmem:[%s876 + $0x111] sm:$0xff]
        %v1432 = vld [vmem:[%s876 + $0x129] sm:$0xff]
        %v1433 = vld [vmem:[%s876 + $0x131] sm:$0xff]
        %v1434 = vld [vmem:[%s876 + $0x149] sm:$0xff]
        %v1435 = vld [vmem:[%s876 + $0x151] sm:$0xff]
        %v1436 = vld [vmem:[%s876 + $0x169] sm:$0xff]
        %v1437 = vld [vmem:[%s876 + $0x171] sm:$0xff]
        %v1438 = vld [vmem:[%s876 + $0x189] sm:$0xff]
        %v1439 = vld [vmem:[%s876 + $0x191] sm:$0xff]
        %v1440 = vld [vmem:[%s876 + $0x1a9] sm:$0xff]
        %v1441 = vld [vmem:[%s876 + $0x1b1] sm:$0xff]
        %v1442 = vld [vmem:[%s876 + $0x1c9] sm:$0xff]
        %v1443 = vld [vmem:[%s876 + $0x1d1] sm:$0xff]
        %v1444 = vld [vmem:[%s876 + $0x1e9] sm:$0xff]
        %v1445 = vld [vmem:[%s876 + $0x1f1] sm:$0xff]
        %v1446 = vld [vmem:[#allocation8 + $0x5] sm:$0x1]
        %v1447 = vlaneseq
        %v1448 = vshrl.u32 %v1447, 7
        %v1449 = vsub.s32 0, %v1448
        %v1450 = vrot.slane %v1446, %v1449
        %v1451 = vmul.f32 %v1414, %v1450
        %v1452 = vmul.f32 %v1415, %v1450
        %v1453 = vmul.f32 %v1416, %v1450
        %v1454 = vmul.f32 %v1417, %v1450
        %v1455 = vmul.f32 %v1418, %v1450
        %v1456 = vmul.f32 %v1419, %v1450
        %v1457 = vmul.f32 %v1420, %v1450
        %v1458 = vmul.f32 %v1421, %v1450
        %v1459 = vmul.f32 %v1422, %v1450
        %v1460 = vmul.f32 %v1423, %v1450
        %v1461 = vmul.f32 %v1424, %v1450
        %v1462 = vmul.f32 %v1425, %v1450
        %v1463 = vmul.f32 %v1426, %v1450
        %v1464 = vmul.f32 %v1427, %v1450
        %v1465 = vmul.f32 %v1428, %v1450
        %v1466 = vmul.f32 %v1429, %v1450
        %v1467 = vmul.f32 %v1430, %v1450
        %v1468 = vmul.f32 %v1431, %v1450
        %v1469 = vmul.f32 %v1432, %v1450
        %v1470 = vmul.f32 %v1433, %v1450
        %v1471 = vmul.f32 %v1434, %v1450
        %v1472 = vmul.f32 %v1435, %v1450
        %v1473 = vmul.f32 %v1436, %v1450
        %v1474 = vmul.f32 %v1437, %v1450
        %v1475 = vmul.f32 %v1438, %v1450
        %v1476 = vmul.f32 %v1439, %v1450
        %v1477 = vmul.f32 %v1440, %v1450
        %v1478 = vmul.f32 %v1441, %v1450
        %v1479 = vmul.f32 %v1442, %v1450
        %v1480 = vmul.f32 %v1443, %v1450
        %v1481 = vmul.f32 %v1444, %v1450
        %v1482 = vmul.f32 %v1445, %v1450
        %v1483 = vadd.f32 %v1382, %v1451
        %v1484 = vadd.f32 %v1383, %v1452
        %v1485 = vadd.f32 %v1384, %v1453
        %v1486 = vadd.f32 %v1385, %v1454
        %v1487 = vadd.f32 %v1386, %v1455
        %v1488 = vadd.f32 %v1387, %v1456
        %v1489 = vadd.f32 %v1388, %v1457
        %v1490 = vadd.f32 %v1389, %v1458
        %v1491 = vadd.f32 %v1390, %v1459
        %v1492 = vadd.f32 %v1391, %v1460
        %v1493 = vadd.f32 %v1392, %v1461
        %v1494 = vadd.f32 %v1393, %v1462
        %v1495 = vadd.f32 %v1394, %v1463
        %v1496 = vadd.f32 %v1395, %v1464
        %v1497 = vadd.f32 %v1396, %v1465
        %v1498 = vadd.f32 %v1397, %v1466
        %v1499 = vadd.f32 %v1398, %v1467
        %v1500 = vadd.f32 %v1399, %v1468
        %v1501 = vadd.f32 %v1400, %v1469
        %v1502 = vadd.f32 %v1401, %v1470
        %v1503 = vadd.f32 %v1402, %v1471
        %v1504 = vadd.f32 %v1403, %v1472
        %v1505 = vadd.f32 %v1404, %v1473
        %v1506 = vadd.f32 %v1405, %v1474
        %v1507 = vadd.f32 %v1406, %v1475
        %v1508 = vadd.f32 %v1407, %v1476
        %v1509 = vadd.f32 %v1408, %v1477
        %v1510 = vadd.f32 %v1409, %v1478
        %v1511 = vadd.f32 %v1410, %v1479
        %v1512 = vadd.f32 %v1411, %v1480
        %v1513 = vadd.f32 %v1412, %v1481
        %v1514 = vadd.f32 %v1413, %v1482
        %s1515 = scalar_lea.vmem [#allocation2], 64
        %v1516 = vld [vmem:[%s1515 + $0x7] sm:$0xff]
        %v1517 = vld [vmem:[%s1515 + $0xf] sm:$0xff]
        %v1518 = vld [vmem:[%s1515 + $0x27] sm:$0xff]
        %v1519 = vld [vmem:[%s1515 + $0x2f] sm:$0xff]
        %v1520 = vld [vmem:[%s1515 + $0x47] sm:$0xff]
        %v1521 = vld [vmem:[%s1515 + $0x4f] sm:$0xff]
        %v1522 = vld [vmem:[%s1515 + $0x67] sm:$0xff]
        %v1523 = vld [vmem:[%s1515 + $0x6f] sm:$0xff]
        %v1524 = vld [vmem:[%s1515 + $0x87] sm:$0xff]
        %v1525 = vld [vmem:[%s1515 + $0x8f] sm:$0xff]
        %v1526 = vld [vmem:[%s1515 + $0xa7] sm:$0xff]
        %v1527 = vld [vmem:[%s1515 + $0xaf] sm:$0xff]
        %v1528 = vld [vmem:[%s1515 + $0xc7] sm:$0xff]
        %v1529 = vld [vmem:[%s1515 + $0xcf] sm:$0xff]
        %v1530 = vld [vmem:[%s1515 + $0xe7] sm:$0xff]
        %v1531 = vld [vmem:[%s1515 + $0xef] sm:$0xff]
        %v1532 = vld [vmem:[%s1515 + $0x107] sm:$0xff]
        %v1533 = vld [vmem:[%s1515 + $0x10f] sm:$0xff]
        %v1534 = vld [vmem:[%s1515 + $0x127] sm:$0xff]
        %v1535 = vld [vmem:[%s1515 + $0x12f] sm:$0xff]
        %v1536 = vld [vmem:[%s1515 + $0x147] sm:$0xff]
        %v1537 = vld [vmem:[%s1515 + $0x14f] sm:$0xff]
        %v1538 = vld [vmem:[%s1515 + $0x167] sm:$0xff]
        %v1539 = vld [vmem:[%s1515 + $0x16f] sm:$0xff]
        %v1540 = vld [vmem:[%s1515 + $0x187] sm:$0xff]
        %v1541 = vld [vmem:[%s1515 + $0x18f] sm:$0xff]
        %v1542 = vld [vmem:[%s1515 + $0x1a7] sm:$0xff]
        %v1543 = vld [vmem:[%s1515 + $0x1af] sm:$0xff]
        %v1544 = vld [vmem:[%s1515 + $0x1c7] sm:$0xff]
        %v1545 = vld [vmem:[%s1515 + $0x1cf] sm:$0xff]
        %v1546 = vld [vmem:[%s1515 + $0x1e7] sm:$0xff]
        %v1547 = vld [vmem:[%s1515 + $0x1ef] sm:$0xff]
        %v1548 = vld [vmem:[#allocation8 + $0x6] sm:$0x1]
        %v1549 = vlaneseq
        %v1550 = vshrl.u32 %v1549, 7
        %v1551 = vsub.s32 0, %v1550
        %v1552 = vrot.slane %v1548, %v1551
        %v1553 = vmul.f32 %v1516, %v1552
        %v1554 = vmul.f32 %v1517, %v1552
        %v1555 = vmul.f32 %v1518, %v1552
        %v1556 = vmul.f32 %v1519, %v1552
        %v1557 = vmul.f32 %v1520, %v1552
        %v1558 = vmul.f32 %v1521, %v1552
        %v1559 = vmul.f32 %v1522, %v1552
        %v1560 = vmul.f32 %v1523, %v1552
        %v1561 = vmul.f32 %v1524, %v1552
        %v1562 = vmul.f32 %v1525, %v1552
        %v1563 = vmul.f32 %v1526, %v1552
        %v1564 = vmul.f32 %v1527, %v1552
        %v1565 = vmul.f32 %v1528, %v1552
        %v1566 = vmul.f32 %v1529, %v1552
        %v1567 = vmul.f32 %v1530, %v1552
        %v1568 = vmul.f32 %v1531, %v1552
        %v1569 = vmul.f32 %v1532, %v1552
        %v1570 = vmul.f32 %v1533, %v1552
        %v1571 = vmul.f32 %v1534, %v1552
        %v1572 = vmul.f32 %v1535, %v1552
        %v1573 = vmul.f32 %v1536, %v1552
        %v1574 = vmul.f32 %v1537, %v1552
        %v1575 = vmul.f32 %v1538, %v1552
        %v1576 = vmul.f32 %v1539, %v1552
        %v1577 = vmul.f32 %v1540, %v1552
        %v1578 = vmul.f32 %v1541, %v1552
        %v1579 = vmul.f32 %v1542, %v1552
        %v1580 = vmul.f32 %v1543, %v1552
        %v1581 = vmul.f32 %v1544, %v1552
        %v1582 = vmul.f32 %v1545, %v1552
        %v1583 = vmul.f32 %v1546, %v1552
        %v1584 = vmul.f32 %v1547, %v1552
        %v1585 = vadd.f32 %v1483, %v1553
        %v1586 = vadd.f32 %v1484, %v1554
        %v1587 = vadd.f32 %v1485, %v1555
        %v1588 = vadd.f32 %v1486, %v1556
        %v1589 = vadd.f32 %v1487, %v1557
        %v1590 = vadd.f32 %v1488, %v1558
        %v1591 = vadd.f32 %v1489, %v1559
        %v1592 = vadd.f32 %v1490, %v1560
        %v1593 = vadd.f32 %v1491, %v1561
        %v1594 = vadd.f32 %v1492, %v1562
        %v1595 = vadd.f32 %v1493, %v1563
        %v1596 = vadd.f32 %v1494, %v1564
        %v1597 = vadd.f32 %v1495, %v1565
        %v1598 = vadd.f32 %v1496, %v1566
        %v1599 = vadd.f32 %v1497, %v1567
        %v1600 = vadd.f32 %v1498, %v1568
        %v1601 = vadd.f32 %v1499, %v1569
        %v1602 = vadd.f32 %v1500, %v1570
        %v1603 = vadd.f32 %v1501, %v1571
        %v1604 = vadd.f32 %v1502, %v1572
        %v1605 = vadd.f32 %v1503, %v1573
        %v1606 = vadd.f32 %v1504, %v1574
        %v1607 = vadd.f32 %v1505, %v1575
        %v1608 = vadd.f32 %v1506, %v1576
        %v1609 = vadd.f32 %v1507, %v1577
        %v1610 = vadd.f32 %v1508, %v1578
        %v1611 = vadd.f32 %v1509, %v1579
        %v1612 = vadd.f32 %v1510, %v1580
        %v1613 = vadd.f32 %v1511, %v1581
        %v1614 = vadd.f32 %v1512, %v1582
        %v1615 = vadd.f32 %v1513, %v1583
        %v1616 = vadd.f32 %v1514, %v1584
        %v1617 = vld [vmem:[%s1515 + $0x8] sm:$0xff]
        %v1618 = vld [vmem:[%s1515 + $0x10] sm:$0xff]
        %v1619 = vld [vmem:[%s1515 + $0x28] sm:$0xff]
        %v1620 = vld [vmem:[%s1515 + $0x30] sm:$0xff]
        %v1621 = vld [vmem:[%s1515 + $0x48] sm:$0xff]
        %v1622 = vld [vmem:[%s1515 + $0x50] sm:$0xff]
        %v1623 = vld [vmem:[%s1515 + $0x68] sm:$0xff]
        %v1624 = vld [vmem:[%s1515 + $0x70] sm:$0xff]
        %v1625 = vld [vmem:[%s1515 + $0x88] sm:$0xff]
        %v1626 = vld [vmem:[%s1515 + $0x90] sm:$0xff]
        %v1627 = vld [vmem:[%s1515 + $0xa8] sm:$0xff]
        %v1628 = vld [vmem:[%s1515 + $0xb0] sm:$0xff]
        %v1629 = vld [vmem:[%s1515 + $0xc8] sm:$0xff]
        %v1630 = vld [vmem:[%s1515 + $0xd0] sm:$0xff]
        %v1631 = vld [vmem:[%s1515 + $0xe8] sm:$0xff]
        %v1632 = vld [vmem:[%s1515 + $0xf0] sm:$0xff]
        %v1633 = vld [vmem:[%s1515 + $0x108] sm:$0xff]
        %v1634 = vld [vmem:[%s1515 + $0x110] sm:$0xff]
        %v1635 = vld [vmem:[%s1515 + $0x128] sm:$0xff]
        %v1636 = vld [vmem:[%s1515 + $0x130] sm:$0xff]
        %v1637 = vld [vmem:[%s1515 + $0x148] sm:$0xff]
        %v1638 = vld [vmem:[%s1515 + $0x150] sm:$0xff]
        %v1639 = vld [vmem:[%s1515 + $0x168] sm:$0xff]
        %v1640 = vld [vmem:[%s1515 + $0x170] sm:$0xff]
        %v1641 = vld [vmem:[%s1515 + $0x188] sm:$0xff]
        %v1642 = vld [vmem:[%s1515 + $0x190] sm:$0xff]
        %v1643 = vld [vmem:[%s1515 + $0x1a8] sm:$0xff]
        %v1644 = vld [vmem:[%s1515 + $0x1b0] sm:$0xff]
        %v1645 = vld [vmem:[%s1515 + $0x1c8] sm:$0xff]
        %v1646 = vld [vmem:[%s1515 + $0x1d0] sm:$0xff]
        %v1647 = vld [vmem:[%s1515 + $0x1e8] sm:$0xff]
        %v1648 = vld [vmem:[%s1515 + $0x1f0] sm:$0xff]
        %v1649 = vld [vmem:[#allocation8 + $0x7] sm:$0x1]
        %v1650 = vlaneseq
        %v1651 = vshrl.u32 %v1650, 7
        %v1652 = vsub.s32 0, %v1651
        %v1653 = vrot.slane %v1649, %v1652
        %v1654 = vmul.f32 %v1617, %v1653
        %v1655 = vmul.f32 %v1618, %v1653
        %v1656 = vmul.f32 %v1619, %v1653
        %v1657 = vmul.f32 %v1620, %v1653
        %v1658 = vmul.f32 %v1621, %v1653
        %v1659 = vmul.f32 %v1622, %v1653
        %v1660 = vmul.f32 %v1623, %v1653
        %v1661 = vmul.f32 %v1624, %v1653
        %v1662 = vmul.f32 %v1625, %v1653
        %v1663 = vmul.f32 %v1626, %v1653
        %v1664 = vmul.f32 %v1627, %v1653
        %v1665 = vmul.f32 %v1628, %v1653
        %v1666 = vmul.f32 %v1629, %v1653
        %v1667 = vmul.f32 %v1630, %v1653
        %v1668 = vmul.f32 %v1631, %v1653
        %v1669 = vmul.f32 %v1632, %v1653
        %v1670 = vmul.f32 %v1633, %v1653
        %v1671 = vmul.f32 %v1634, %v1653
        %v1672 = vmul.f32 %v1635, %v1653
        %v1673 = vmul.f32 %v1636, %v1653
        %v1674 = vmul.f32 %v1637, %v1653
        %v1675 = vmul.f32 %v1638, %v1653
        %v1676 = vmul.f32 %v1639, %v1653
        %v1677 = vmul.f32 %v1640, %v1653
        %v1678 = vmul.f32 %v1641, %v1653
        %v1679 = vmul.f32 %v1642, %v1653
        %v1680 = vmul.f32 %v1643, %v1653
        %v1681 = vmul.f32 %v1644, %v1653
        %v1682 = vmul.f32 %v1645, %v1653
        %v1683 = vmul.f32 %v1646, %v1653
        %v1684 = vmul.f32 %v1647, %v1653
        %v1685 = vmul.f32 %v1648, %v1653
        %v1686 = vadd.f32 %v1585, %v1654
        %v1687 = vadd.f32 %v1586, %v1655
        %v1688 = vadd.f32 %v1587, %v1656
        %v1689 = vadd.f32 %v1588, %v1657
        %v1690 = vadd.f32 %v1589, %v1658
        %v1691 = vadd.f32 %v1590, %v1659
        %v1692 = vadd.f32 %v1591, %v1660
        %v1693 = vadd.f32 %v1592, %v1661
        %v1694 = vadd.f32 %v1593, %v1662
        %v1695 = vadd.f32 %v1594, %v1663
        %v1696 = vadd.f32 %v1595, %v1664
        %v1697 = vadd.f32 %v1596, %v1665
        %v1698 = vadd.f32 %v1597, %v1666
        %v1699 = vadd.f32 %v1598, %v1667
        %v1700 = vadd.f32 %v1599, %v1668
        %v1701 = vadd.f32 %v1600, %v1669
        %v1702 = vadd.f32 %v1601, %v1670
        %v1703 = vadd.f32 %v1602, %v1671
        %v1704 = vadd.f32 %v1603, %v1672
        %v1705 = vadd.f32 %v1604, %v1673
        %v1706 = vadd.f32 %v1605, %v1674
        %v1707 = vadd.f32 %v1606, %v1675
        %v1708 = vadd.f32 %v1607, %v1676
        %v1709 = vadd.f32 %v1608, %v1677
        %v1710 = vadd.f32 %v1609, %v1678
        %v1711 = vadd.f32 %v1610, %v1679
        %v1712 = vadd.f32 %v1611, %v1680
        %v1713 = vadd.f32 %v1612, %v1681
        %v1714 = vadd.f32 %v1613, %v1682
        %v1715 = vadd.f32 %v1614, %v1683
        %v1716 = vadd.f32 %v1615, %v1684
        %v1717 = vadd.f32 %v1616, %v1685
        %v1718 = vld [vmem:[%s1515 + $0x9] sm:$0xff]
        %v1719 = vld [vmem:[%s1515 + $0x11] sm:$0xff]
        %v1720 = vld [vmem:[%s1515 + $0x29] sm:$0xff]
        %v1721 = vld [vmem:[%s1515 + $0x31] sm:$0xff]
        %v1722 = vld [vmem:[%s1515 + $0x49] sm:$0xff]
        %v1723 = vld [vmem:[%s1515 + $0x51] sm:$0xff]
        %v1724 = vld [vmem:[%s1515 + $0x69] sm:$0xff]
        %v1725 = vld [vmem:[%s1515 + $0x71] sm:$0xff]
        %v1726 = vld [vmem:[%s1515 + $0x89] sm:$0xff]
        %v1727 = vld [vmem:[%s1515 + $0x91] sm:$0xff]
        %v1728 = vld [vmem:[%s1515 + $0xa9] sm:$0xff]
        %v1729 = vld [vmem:[%s1515 + $0xb1] sm:$0xff]
        %v1730 = vld [vmem:[%s1515 + $0xc9] sm:$0xff]
        %v1731 = vld [vmem:[%s1515 + $0xd1] sm:$0xff]
        %v1732 = vld [vmem:[%s1515 + $0xe9] sm:$0xff]
        %v1733 = vld [vmem:[%s1515 + $0xf1] sm:$0xff]
        %v1734 = vld [vmem:[%s1515 + $0x109] sm:$0xff]
        %v1735 = vld [vmem:[%s1515 + $0x111] sm:$0xff]
        %v1736 = vld [vmem:[%s1515 + $0x129] sm:$0xff]
        %v1737 = vld [vmem:[%s1515 + $0x131] sm:$0xff]
        %v1738 = vld [vmem:[%s1515 + $0x149] sm:$0xff]
        %v1739 = vld [vmem:[%s1515 + $0x151] sm:$0xff]
        %v1740 = vld [vmem:[%s1515 + $0x169] sm:$0xff]
        %v1741 = vld [vmem:[%s1515 + $0x171] sm:$0xff]
        %v1742 = vld [vmem:[%s1515 + $0x189] sm:$0xff]
        %v1743 = vld [vmem:[%s1515 + $0x191] sm:$0xff]
        %v1744 = vld [vmem:[%s1515 + $0x1a9] sm:$0xff]
        %v1745 = vld [vmem:[%s1515 + $0x1b1] sm:$0xff]
        %v1746 = vld [vmem:[%s1515 + $0x1c9] sm:$0xff]
        %v1747 = vld [vmem:[%s1515 + $0x1d1] sm:$0xff]
        %v1748 = vld [vmem:[%s1515 + $0x1e9] sm:$0xff]
        %v1749 = vld [vmem:[%s1515 + $0x1f1] sm:$0xff]
        %v1750 = vld [vmem:[#allocation8 + $0x8] sm:$0x1]
        %v1751 = vlaneseq
        %v1752 = vshrl.u32 %v1751, 7
        %v1753 = vsub.s32 0, %v1752
        %v1754 = vrot.slane %v1750, %v1753
        %v1755 = vmul.f32 %v1718, %v1754
        %v1756 = vmul.f32 %v1719, %v1754
        %v1757 = vmul.f32 %v1720, %v1754
        %v1758 = vmul.f32 %v1721, %v1754
        %v1759 = vmul.f32 %v1722, %v1754
        %v1760 = vmul.f32 %v1723, %v1754
        %v1761 = vmul.f32 %v1724, %v1754
        %v1762 = vmul.f32 %v1725, %v1754
        %v1763 = vmul.f32 %v1726, %v1754
        %v1764 = vmul.f32 %v1727, %v1754
        %v1765 = vmul.f32 %v1728, %v1754
        %v1766 = vmul.f32 %v1729, %v1754
        %v1767 = vmul.f32 %v1730, %v1754
        %v1768 = vmul.f32 %v1731, %v1754
        %v1769 = vmul.f32 %v1732, %v1754
        %v1770 = vmul.f32 %v1733, %v1754
        %v1771 = vmul.f32 %v1734, %v1754
        %v1772 = vmul.f32 %v1735, %v1754
        %v1773 = vmul.f32 %v1736, %v1754
        %v1774 = vmul.f32 %v1737, %v1754
        %v1775 = vmul.f32 %v1738, %v1754
        %v1776 = vmul.f32 %v1739, %v1754
        %v1777 = vmul.f32 %v1740, %v1754
        %v1778 = vmul.f32 %v1741, %v1754
        %v1779 = vmul.f32 %v1742, %v1754
        %v1780 = vmul.f32 %v1743, %v1754
        %v1781 = vmul.f32 %v1744, %v1754
        %v1782 = vmul.f32 %v1745, %v1754
        %v1783 = vmul.f32 %v1746, %v1754
        %v1784 = vmul.f32 %v1747, %v1754
        %v1785 = vmul.f32 %v1748, %v1754
        %v1786 = vmul.f32 %v1749, %v1754
        %v1787 = vadd.f32 %v1686, %v1755
        %v1788 = vadd.f32 %v1687, %v1756
        %v1789 = vadd.f32 %v1688, %v1757
        %v1790 = vadd.f32 %v1689, %v1758
        %v1791 = vadd.f32 %v1690, %v1759
        %v1792 = vadd.f32 %v1691, %v1760
        %v1793 = vadd.f32 %v1692, %v1761
        %v1794 = vadd.f32 %v1693, %v1762
        %v1795 = vadd.f32 %v1694, %v1763
        %v1796 = vadd.f32 %v1695, %v1764
        %v1797 = vadd.f32 %v1696, %v1765
        %v1798 = vadd.f32 %v1697, %v1766
        %v1799 = vadd.f32 %v1698, %v1767
        %v1800 = vadd.f32 %v1699, %v1768
        %v1801 = vadd.f32 %v1700, %v1769
        %v1802 = vadd.f32 %v1701, %v1770
        %v1803 = vadd.f32 %v1702, %v1771
        %v1804 = vadd.f32 %v1703, %v1772
        %v1805 = vadd.f32 %v1704, %v1773
        %v1806 = vadd.f32 %v1705, %v1774
        %v1807 = vadd.f32 %v1706, %v1775
        %v1808 = vadd.f32 %v1707, %v1776
        %v1809 = vadd.f32 %v1708, %v1777
        %v1810 = vadd.f32 %v1709, %v1778
        %v1811 = vadd.f32 %v1710, %v1779
        %v1812 = vadd.f32 %v1711, %v1780
        %v1813 = vadd.f32 %v1712, %v1781
        %v1814 = vadd.f32 %v1713, %v1782
        %v1815 = vadd.f32 %v1714, %v1783
        %v1816 = vadd.f32 %v1715, %v1784
        %v1817 = vadd.f32 %v1716, %v1785
        %v1818 = vadd.f32 %v1717, %v1786
        %v1819 = vld [vmem:[%s5] sm:$0x1]
        %v1821 = vlaneseq
        %v1822 = vshrl.u32 %v1821, 7
        %v1823 = vsub.s32 0, %v1822
        %v1824 = vrot.slane %v1819, %v1823
        %v1826 = vmul.f32 %v1787, %v1824
        %v1827 = vmul.f32 %v1788, %v1824
        %v1828 = vmul.f32 %v1789, %v1824
        %v1829 = vmul.f32 %v1790, %v1824
        %v1830 = vmul.f32 %v1791, %v1824
        %v1831 = vmul.f32 %v1792, %v1824
        %v1832 = vmul.f32 %v1793, %v1824
        %v1833 = vmul.f32 %v1794, %v1824
        %v1834 = vmul.f32 %v1795, %v1824
        %v1835 = vmul.f32 %v1796, %v1824
        %v1836 = vmul.f32 %v1797, %v1824
        %v1837 = vmul.f32 %v1798, %v1824
        %v1838 = vmul.f32 %v1799, %v1824
        %v1839 = vmul.f32 %v1800, %v1824
        %v1840 = vmul.f32 %v1801, %v1824
        %v1841 = vmul.f32 %v1802, %v1824
        %v1842 = vmul.f32 %v1803, %v1824
        %v1843 = vmul.f32 %v1804, %v1824
        %v1844 = vmul.f32 %v1805, %v1824
        %v1845 = vmul.f32 %v1806, %v1824
        %v1846 = vmul.f32 %v1807, %v1824
        %v1847 = vmul.f32 %v1808, %v1824
        %v1848 = vmul.f32 %v1809, %v1824
        %v1849 = vmul.f32 %v1810, %v1824
        %v1850 = vmul.f32 %v1811, %v1824
        %v1851 = vmul.f32 %v1812, %v1824
        %v1852 = vmul.f32 %v1813, %v1824
        %v1853 = vmul.f32 %v1814, %v1824
        %v1854 = vmul.f32 %v1815, %v1824
        %v1855 = vmul.f32 %v1816, %v1824
        %v1856 = vmul.f32 %v1817, %v1824
        %v1857 = vmul.f32 %v1818, %v1824
        %v1858 = vld [vmem:[%s6] sm:$0x1]
        %v1860 = vlaneseq
        %v1861 = vshrl.u32 %v1860, 7
        %v1862 = vsub.s32 0, %v1861
        %v1863 = vrot.slane %v1858, %v1862
        %v1865 = vadd.f32 %v1826, %v1863
        %v1866 = vadd.f32 %v1827, %v1863
        %v1867 = vadd.f32 %v1828, %v1863
        %v1868 = vadd.f32 %v1829, %v1863
        %v1869 = vadd.f32 %v1830, %v1863
        %v1870 = vadd.f32 %v1831, %v1863
        %v1871 = vadd.f32 %v1832, %v1863
        %v1872 = vadd.f32 %v1833, %v1863
        %v1873 = vadd.f32 %v1834, %v1863
        %v1874 = vadd.f32 %v1835, %v1863
        %v1875 = vadd.f32 %v1836, %v1863
        %v1876 = vadd.f32 %v1837, %v1863
        %v1877 = vadd.f32 %v1838, %v1863
        %v1878 = vadd.f32 %v1839, %v1863
        %v1879 = vadd.f32 %v1840, %v1863
        %v1880 = vadd.f32 %v1841, %v1863
        %v1881 = vadd.f32 %v1842, %v1863
        %v1882 = vadd.f32 %v1843, %v1863
        %v1883 = vadd.f32 %v1844, %v1863
        %v1884 = vadd.f32 %v1845, %v1863
        %v1885 = vadd.f32 %v1846, %v1863
        %v1886 = vadd.f32 %v1847, %v1863
        %v1887 = vadd.f32 %v1848, %v1863
        %v1888 = vadd.f32 %v1849, %v1863
        %v1889 = vadd.f32 %v1850, %v1863
        %v1890 = vadd.f32 %v1851, %v1863
        %v1891 = vadd.f32 %v1852, %v1863
        %v1892 = vadd.f32 %v1853, %v1863
        %v1893 = vadd.f32 %v1854, %v1863
        %v1894 = vadd.f32 %v1855, %v1863
        %v1895 = vadd.f32 %v1856, %v1863
        %v1896 = vadd.f32 %v1857, %v1863
        %v1897 = vld [vmem:[#allocation9] sm:$0xff]
        %v1898 = vld [vmem:[#allocation9 + $0x8] sm:$0xff]
        %v1899 = vld [vmem:[#allocation9 + $0x10] sm:$0xff]
        %v1900 = vld [vmem:[#allocation9 + $0x18] sm:$0xff]
        %v1902 = vsel %vm482, %v1865, 0
        %v1905 = vsel %vm482, %v1866, 0
        %v1908 = vsel %vm482, %v1867, 0
        %v1911 = vsel %vm482, %v1868, 0
        %v1914 = vsel %vm482, %v1869, 0
        %v1917 = vsel %vm482, %v1870, 0
        %v1920 = vsel %vm482, %v1871, 0
        %v1923 = vsel %vm482, %v1872, 0
        %v1926 = vsel %vm482, %v1873, 0
        %v1929 = vsel %vm482, %v1874, 0
        %v1932 = vsel %vm482, %v1875, 0
        %v1935 = vsel %vm482, %v1876, 0
        %v1938 = vsel %vm482, %v1877, 0
        %v1941 = vsel %vm482, %v1878, 0
        %v1944 = vsel %vm482, %v1879, 0
        %v1947 = vsel %vm482, %v1880, 0
        %v1950 = vsel %vm482, %v1881, 0
        %v1953 = vsel %vm482, %v1882, 0
        %v1956 = vsel %vm482, %v1883, 0
        %v1959 = vsel %vm482, %v1884, 0
        %v1962 = vsel %vm482, %v1885, 0
        %v1965 = vsel %vm482, %v1886, 0
        %v1968 = vsel %vm482, %v1887, 0
        %v1971 = vsel %vm482, %v1888, 0
        %v1974 = vsel %vm482, %v1889, 0
        %v1977 = vsel %vm482, %v1890, 0
        %v1980 = vsel %vm482, %v1891, 0
        %v1983 = vsel %vm482, %v1892, 0
        %v1986 = vsel %vm482, %v1893, 0
        %v1989 = vsel %vm482, %v1894, 0
        %v1992 = vsel %vm482, %v1895, 0
        %v1995 = vsel %vm482, %v1896, 0
        %1997 = vmatprep.subr.mxu0 0.0
        %1998 = vmatpush1.msra.mxu0 0.0
        %1999 = vmatprep.subr.mxu0 0.0
        %2000 = vmatpush1.msra.mxu0 0.0
        %2001 = vmatprep.subr.mxu0 0.0
        %2002 = vmatpush1.msra.mxu0 0.0
        %2003 = vmatprep.subr.mxu0 0.0
        %2004 = vmatpush1.msra.mxu0 0.0
        %2005 = vmatprep.subr.mxu0 0.0
        %2006 = vmatpush1.msra.mxu0 0.0
        %2007 = vmatprep.subr.mxu0 0.0
        %2008 = vmatpush1.msra.mxu0 0.0
        %2009 = vmatprep.subr.mxu0 0.0
        %2010 = vmatpush1.msra.mxu0 0.0
        %2011 = vmatprep.subr.mxu0 0.0
        %2012 = vmatpush1.msra.mxu0 0.0
        %2013 = vmatprep.subr.mxu0 0.0
        %2014 = vmatpush1.msra.mxu0 0.0
        %2015 = vmatprep.subr.mxu0 0.0
        %2016 = vmatpush1.msra.mxu0 0.0
        %2017 = vmatprep.subr.mxu0 0.0
        %2018 = vmatpush1.msra.mxu0 0.0
        %2019 = vmatprep.subr.mxu0 0.0
        %2020 = vmatpush1.msra.mxu0 0.0
        %2021 = vmatprep.subr.mxu0 0.0
        %2022 = vmatpush1.msra.mxu0 %v1900
        %2023 = vmatprep.subr.mxu0 0.0
        %2024 = vmatpush1.msra.mxu0 %v1899
        %2025 = vmatprep.subr.mxu0 0.0
        %2026 = vmatpush1.msra.mxu0 %v1898
        %2027 = vmatprep.subr.mxu0 0.0
        %2028 = vmatpush1.msra.mxu0 %v1897
        %2029 = vmatprep.subr.mxu0 0.0
        %2030 = vmatpush2.msra.mxu0 0.0
        %2031 = vmatprep.subr.mxu0 0.0
        %2032 = vmatpush2.msra.mxu0 0.0
        %2033 = vmatprep.subr.mxu0 0.0
        %2034 = vmatpush2.msra.mxu0 0.0
        %2035 = vmatprep.subr.mxu0 0.0
        %2036 = vmatpush2.msra.mxu0 0.0
        %2037 = vmatprep.subr.mxu0 0.0
        %2038 = vmatpush2.msra.mxu0 0.0
        %2039 = vmatprep.subr.mxu0 0.0
        %2040 = vmatpush2.msra.mxu0 0.0
        %2041 = vmatprep.subr.mxu0 0.0
        %2042 = vmatpush2.msra.mxu0 0.0
        %2043 = vmatprep.subr.mxu0 0.0
        %2044 = vmatpush2.msra.mxu0 0.0
        %2045 = vmatprep.subr.mxu0 0.0
        %2046 = vmatpush2.msra.mxu0 0.0
        %2047 = vmatprep.subr.mxu0 0.0
        %2048 = vmatpush2.msra.mxu0 0.0
        %2049 = vmatprep.subr.mxu0 0.0
        %2050 = vmatpush2.msra.mxu0 0.0
        %2051 = vmatprep.subr.mxu0 0.0
        %2052 = vmatpush2.msra.mxu0 0.0
        %2053 = vmatprep.subr.mxu0 0.0
        %2054 = vmatpush2.msra.mxu0 0.0
        %2055 = vmatprep.subr.mxu0 0.0
        %2056 = vmatpush2.msra.mxu0 0.0
        %2057 = vmatprep.subr.mxu0 0.0
        %2058 = vmatpush2.msra.mxu0 0.0
        %2059 = vmatprep.subr.mxu0 0.0
        %2060 = vmatpush2.msra.mxu0 0.0
        %2061 = vmatprep.mubr.f32.mxu0 0.0
        %2062 = vmatmul.mubr.f32.gmra.mxu0 %v1902
        %v2063 = vpop.f32.mrf.mxu0
        %v2064 = vadd.f32 0.0, %v2063
        %v2065 = vpop.f32.mrf.mxu0
        %2066 = vmatprep.mubr.f32.mxu0 0.0
        %2067 = vmatmul.mubr.f32.gmra.mxu0 %v1905
        %v2068 = vpop.f32.mrf.mxu0
        %v2069 = vadd.f32 0.0, %v2068
        %v2070 = vpop.f32.mrf.mxu0
        %2071 = vmatprep.mubr.f32.mxu0 0.0
        %2072 = vmatmul.mubr.f32.gmra.mxu0 %v1908
        %v2073 = vpop.f32.mrf.mxu0
        %v2074 = vadd.f32 0.0, %v2073
        %v2075 = vpop.f32.mrf.mxu0
        %2076 = vmatprep.mubr.f32.mxu0 0.0
        %2077 = vmatmul.mubr.f32.gmra.mxu0 %v1911
        %v2078 = vpop.f32.mrf.mxu0
        %v2079 = vadd.f32 0.0, %v2078
        %v2080 = vpop.f32.mrf.mxu0
        %2081 = vmatprep.mubr.f32.mxu0 0.0
        %2082 = vmatmul.mubr.f32.gmra.mxu0 %v1914
        %v2083 = vpop.f32.mrf.mxu0
        %v2084 = vadd.f32 0.0, %v2083
        %v2085 = vpop.f32.mrf.mxu0
        %2086 = vmatprep.mubr.f32.mxu0 0.0
        %2087 = vmatmul.mubr.f32.gmra.mxu0 %v1917
        %v2088 = vpop.f32.mrf.mxu0
        %v2089 = vadd.f32 0.0, %v2088
        %v2090 = vpop.f32.mrf.mxu0
        %2091 = vmatprep.mubr.f32.mxu0 0.0
        %2092 = vmatmul.mubr.f32.gmra.mxu0 %v1920
        %v2093 = vpop.f32.mrf.mxu0
        %v2094 = vadd.f32 0.0, %v2093
        %v2095 = vpop.f32.mrf.mxu0
        %2096 = vmatprep.mubr.f32.mxu0 0.0
        %2097 = vmatmul.mubr.f32.gmra.mxu0 %v1923
        %v2098 = vpop.f32.mrf.mxu0
        %v2099 = vadd.f32 0.0, %v2098
        %v2100 = vpop.f32.mrf.mxu0
        %2101 = vmatprep.mubr.f32.mxu0 0.0
        %2102 = vmatmul.mubr.f32.gmra.mxu0 %v1926
        %v2103 = vpop.f32.mrf.mxu0
        %v2104 = vadd.f32 0.0, %v2103
        %v2105 = vpop.f32.mrf.mxu0
        %2106 = vmatprep.mubr.f32.mxu0 0.0
        %2107 = vmatmul.mubr.f32.gmra.mxu0 %v1929
        %v2108 = vpop.f32.mrf.mxu0
        %v2109 = vadd.f32 0.0, %v2108
        %v2110 = vpop.f32.mrf.mxu0
        %2111 = vmatprep.mubr.f32.mxu0 0.0
        %2112 = vmatmul.mubr.f32.gmra.mxu0 %v1932
        %v2113 = vpop.f32.mrf.mxu0
        %v2114 = vadd.f32 0.0, %v2113
        %v2115 = vpop.f32.mrf.mxu0
        %2116 = vmatprep.mubr.f32.mxu0 0.0
        %2117 = vmatmul.mubr.f32.gmra.mxu0 %v1935
        %v2118 = vpop.f32.mrf.mxu0
        %v2119 = vadd.f32 0.0, %v2118
        %v2120 = vpop.f32.mrf.mxu0
        %2121 = vmatprep.mubr.f32.mxu0 0.0
        %2122 = vmatmul.mubr.f32.gmra.mxu0 %v1938
        %v2123 = vpop.f32.mrf.mxu0
        %v2124 = vadd.f32 0.0, %v2123
        %v2125 = vpop.f32.mrf.mxu0
        %2126 = vmatprep.mubr.f32.mxu0 0.0
        %2127 = vmatmul.mubr.f32.gmra.mxu0 %v1941
        %v2128 = vpop.f32.mrf.mxu0
        %v2129 = vadd.f32 0.0, %v2128
        %v2130 = vpop.f32.mrf.mxu0
        %2131 = vmatprep.mubr.f32.mxu0 0.0
        %2132 = vmatmul.mubr.f32.gmra.mxu0 %v1944
        %v2133 = vpop.f32.mrf.mxu0
        %v2134 = vadd.f32 0.0, %v2133
        %v2135 = vpop.f32.mrf.mxu0
        %2136 = vmatprep.mubr.f32.mxu0 0.0
        %2137 = vmatmul.mubr.f32.gmra.mxu0 %v1947
        %v2138 = vpop.f32.mrf.mxu0
        %v2139 = vadd.f32 0.0, %v2138
        %v2140 = vpop.f32.mrf.mxu0
        %2141 = vmatprep.mubr.f32.mxu0 0.0
        %2142 = vmatmul.mubr.f32.gmra.mxu0 %v1950
        %v2143 = vpop.f32.mrf.mxu0
        %v2144 = vadd.f32 0.0, %v2143
        %v2145 = vpop.f32.mrf.mxu0
        %2146 = vmatprep.mubr.f32.mxu0 0.0
        %2147 = vmatmul.mubr.f32.gmra.mxu0 %v1953
        %v2148 = vpop.f32.mrf.mxu0
        %v2149 = vadd.f32 0.0, %v2148
        %v2150 = vpop.f32.mrf.mxu0
        %2151 = vmatprep.mubr.f32.mxu0 0.0
        %2152 = vmatmul.mubr.f32.gmra.mxu0 %v1956
        %v2153 = vpop.f32.mrf.mxu0
        %v2154 = vadd.f32 0.0, %v2153
        %v2155 = vpop.f32.mrf.mxu0
        %2156 = vmatprep.mubr.f32.mxu0 0.0
        %2157 = vmatmul.mubr.f32.gmra.mxu0 %v1959
        %v2158 = vpop.f32.mrf.mxu0
        %v2159 = vadd.f32 0.0, %v2158
        %v2160 = vpop.f32.mrf.mxu0
        %2161 = vmatprep.mubr.f32.mxu0 0.0
        %2162 = vmatmul.mubr.f32.gmra.mxu0 %v1962
        %v2163 = vpop.f32.mrf.mxu0
        %v2164 = vadd.f32 0.0, %v2163
        %v2165 = vpop.f32.mrf.mxu0
        %2166 = vmatprep.mubr.f32.mxu0 0.0
        %2167 = vmatmul.mubr.f32.gmra.mxu0 %v1965
        %v2168 = vpop.f32.mrf.mxu0
        %v2169 = vadd.f32 0.0, %v2168
        %v2170 = vpop.f32.mrf.mxu0
        %2171 = vmatprep.mubr.f32.mxu0 0.0
        %2172 = vmatmul.mubr.f32.gmra.mxu0 %v1968
        %v2173 = vpop.f32.mrf.mxu0
        %v2174 = vadd.f32 0.0, %v2173
        %v2175 = vpop.f32.mrf.mxu0
        %2176 = vmatprep.mubr.f32.mxu0 0.0
        %2177 = vmatmul.mubr.f32.gmra.mxu0 %v1971
        %v2178 = vpop.f32.mrf.mxu0
        %v2179 = vadd.f32 0.0, %v2178
        %v2180 = vpop.f32.mrf.mxu0
        %2181 = vmatprep.mubr.f32.mxu0 0.0
        %2182 = vmatmul.mubr.f32.gmra.mxu0 %v1974
        %v2183 = vpop.f32.mrf.mxu0
        %v2184 = vadd.f32 0.0, %v2183
        %v2185 = vpop.f32.mrf.mxu0
        %2186 = vmatprep.mubr.f32.mxu0 0.0
        %2187 = vmatmul.mubr.f32.gmra.mxu0 %v1977
        %v2188 = vpop.f32.mrf.mxu0
        %v2189 = vadd.f32 0.0, %v2188
        %v2190 = vpop.f32.mrf.mxu0
        %2191 = vmatprep.mubr.f32.mxu0 0.0
        %2192 = vmatmul.mubr.f32.gmra.mxu0 %v1980
        %v2193 = vpop.f32.mrf.mxu0
        %v2194 = vadd.f32 0.0, %v2193
        %v2195 = vpop.f32.mrf.mxu0
        %2196 = vmatprep.mubr.f32.mxu0 0.0
        %2197 = vmatmul.mubr.f32.gmra.mxu0 %v1983
        %v2198 = vpop.f32.mrf.mxu0
        %v2199 = vadd.f32 0.0, %v2198
        %v2200 = vpop.f32.mrf.mxu0
        %2201 = vmatprep.mubr.f32.mxu0 0.0
        %2202 = vmatmul.mubr.f32.gmra.mxu0 %v1986
        %v2203 = vpop.f32.mrf.mxu0
        %v2204 = vadd.f32 0.0, %v2203
        %v2205 = vpop.f32.mrf.mxu0
        %2206 = vmatprep.mubr.f32.mxu0 0.0
        %2207 = vmatmul.mubr.f32.gmra.mxu0 %v1989
        %v2208 = vpop.f32.mrf.mxu0
        %v2209 = vadd.f32 0.0, %v2208
        %v2210 = vpop.f32.mrf.mxu0
        %2211 = vmatprep.mubr.f32.mxu0 0.0
        %2212 = vmatmul.mubr.f32.gmra.mxu0 %v1992
        %v2213 = vpop.f32.mrf.mxu0
        %v2214 = vadd.f32 0.0, %v2213
        %v2215 = vpop.f32.mrf.mxu0
        %2216 = vmatprep.mubr.f32.mxu0 0.0
        %2217 = vmatmul.mubr.f32.gmra.mxu0 %v1995
        %v2218 = vpop.f32.mrf.mxu0
        %v2219 = vadd.f32 0.0, %v2218
        %v2220 = vpop.f32.mrf.mxu0
        %2221 = vdwg.mxu0
        %v2222 = vadd.f32 %v2064, %v368
        %v2223 = vadd.f32 %v2069, %v369
        %v2224 = vadd.f32 %v2074, %v370
        %v2225 = vadd.f32 %v2079, %v371
        %v2226 = vadd.f32 %v2084, %v372
        %v2227 = vadd.f32 %v2089, %v373
        %v2228 = vadd.f32 %v2094, %v374
        %v2229 = vadd.f32 %v2099, %v375
        %v2230 = vadd.f32 %v2104, %v376
        %v2231 = vadd.f32 %v2109, %v377
        %v2232 = vadd.f32 %v2114, %v378
        %v2233 = vadd.f32 %v2119, %v379
        %v2234 = vadd.f32 %v2124, %v380
        %v2235 = vadd.f32 %v2129, %v381
        %v2236 = vadd.f32 %v2134, %v382
        %v2237 = vadd.f32 %v2139, %v383
        %v2238 = vadd.f32 %v2144, %v384
        %v2239 = vadd.f32 %v2149, %v385
        %v2240 = vadd.f32 %v2154, %v386
        %v2241 = vadd.f32 %v2159, %v387
        %v2242 = vadd.f32 %v2164, %v388
        %v2243 = vadd.f32 %v2169, %v389
        %v2244 = vadd.f32 %v2174, %v390
        %v2245 = vadd.f32 %v2179, %v391
        %v2246 = vadd.f32 %v2184, %v392
        %v2247 = vadd.f32 %v2189, %v393
        %v2248 = vadd.f32 %v2194, %v394
        %v2249 = vadd.f32 %v2199, %v395
        %v2250 = vadd.f32 %v2204, %v396
        %v2251 = vadd.f32 %v2209, %v397
        %v2252 = vadd.f32 %v2214, %v398
        %v2253 = vadd.f32 %v2219, %v399
        %2254 = vst.msk [vmem:[%s367] sm:$0xff] %vm482, %v2222
        %2255 = vst.msk [vmem:[%s367 + $0x8] sm:$0xff] %vm482, %v2223
        %2256 = vst.msk [vmem:[%s367 + $0x10] sm:$0xff] %vm482, %v2224
        %2257 = vst.msk [vmem:[%s367 + $0x18] sm:$0xff] %vm482, %v2225
        %2258 = vst.msk [vmem:[%s367 + $0x20] sm:$0xff] %vm482, %v2226
        %2259 = vst.msk [vmem:[%s367 + $0x28] sm:$0xff] %vm482, %v2227
        %2260 = vst.msk [vmem:[%s367 + $0x30] sm:$0xff] %vm482, %v2228
        %2261 = vst.msk [vmem:[%s367 + $0x38] sm:$0xff] %vm482, %v2229
        %2262 = vst.msk [vmem:[%s367 + $0x40] sm:$0xff] %vm482, %v2230
        %2263 = vst.msk [vmem:[%s367 + $0x48] sm:$0xff] %vm482, %v2231
        %2264 = vst.msk [vmem:[%s367 + $0x50] sm:$0xff] %vm482, %v2232
        %2265 = vst.msk [vmem:[%s367 + $0x58] sm:$0xff] %vm482, %v2233
        %2266 = vst.msk [vmem:[%s367 + $0x60] sm:$0xff] %vm482, %v2234
        %2267 = vst.msk [vmem:[%s367 + $0x68] sm:$0xff] %vm482, %v2235
        %2268 = vst.msk [vmem:[%s367 + $0x70] sm:$0xff] %vm482, %v2236
        %2269 = vst.msk [vmem:[%s367 + $0x78] sm:$0xff] %vm482, %v2237
        %2270 = vst.msk [vmem:[%s367 + $0x80] sm:$0xff] %vm482, %v2238
        %2271 = vst.msk [vmem:[%s367 + $0x88] sm:$0xff] %vm482, %v2239
        %2272 = vst.msk [vmem:[%s367 + $0x90] sm:$0xff] %vm482, %v2240
        %2273 = vst.msk [vmem:[%s367 + $0x98] sm:$0xff] %vm482, %v2241
        %2274 = vst.msk [vmem:[%s367 + $0xa0] sm:$0xff] %vm482, %v2242
        %2275 = vst.msk [vmem:[%s367 + $0xa8] sm:$0xff] %vm482, %v2243
        %2276 = vst.msk [vmem:[%s367 + $0xb0] sm:$0xff] %vm482, %v2244
        %2277 = vst.msk [vmem:[%s367 + $0xb8] sm:$0xff] %vm482, %v2245
        %2278 = vst.msk [vmem:[%s367 + $0xc0] sm:$0xff] %vm482, %v2246
        %2279 = vst.msk [vmem:[%s367 + $0xc8] sm:$0xff] %vm482, %v2247
        %2280 = vst.msk [vmem:[%s367 + $0xd0] sm:$0xff] %vm482, %v2248
        %2281 = vst.msk [vmem:[%s367 + $0xd8] sm:$0xff] %vm482, %v2249
        %2282 = vst.msk [vmem:[%s367 + $0xe0] sm:$0xff] %vm482, %v2250
        %2283 = vst.msk [vmem:[%s367 + $0xe8] sm:$0xff] %vm482, %v2251
        %2284 = vst.msk [vmem:[%s367 + $0xf0] sm:$0xff] %vm482, %v2252
        %2285 = vst.msk [vmem:[%s367 + $0xf8] sm:$0xff] %vm482, %v2253
        %s2286 = sand.u32 %s208, 1
        %s2287 = scalar_lea.sflag [#allocation5], %s2286
        %s2288 = sand.u32 %s208, 1
        %s2289 = smul.addr %s2288, 256
        %s2290 = scalar_lea.vmem [#allocation11], %s2289
        // Predicated region
        $region69: #{tpu_custom_call.1} parent=51 // pred_check
          %p2291 = pneg %p218
        $region70: #{tpu_custom_call.1} parent=51 // pred_check_branch
          %2293 = sbr.rel (%p2291) target = $region72
        $region71: #{tpu_custom_call.1} parent=51 // pred_region
          %s2295 = ssub.s32 4096, 4096
          %2296 = vsyncadd %s2287, %s2295
          %s2297 = smul.addr %s27, 32
          %s2298 = smul.addr %s2297, 128
          %s2299 = scalar_lea.hbm %s8, %s2298
          %s2300 = sshll.u32 %s2290, 4
          %s2301 = int_to_ptr.vmem [resolvable:$true] %s2300
          %2306 = dma.vmem_to_hbm [thread:$0]  %s2301, 4096, %s2299, %s2287, 128, 128, 8
        $region72: #{tpu_custom_call.1} parent=51 // pred_fallthru
          _
      $region52: #{tpu_custom_call.1} parent=5 // pred_fallthru
        _
      %p2307 = scmp.le.s32.totalorder 2, %s22
      // Predicated region
      $region73: #{tpu_custom_call.1} parent=5 // pred_check
        %p2308 = pneg %p2307
      $region74: #{tpu_custom_call.1} parent=5 // pred_check_branch
        %2310 = sbr.rel (%p2308) target = $region76
      $region75: #{tpu_custom_call.1} parent=5 // pred_region
        %s2311 = ssub.s32 %s22, 2
        // Predicated region
        $region77: #{tpu_custom_call.1} parent=75 // pred_check
          %p2312 = pneg %p224
        $region78: #{tpu_custom_call.1} parent=75 // pred_check_branch
          %2314 = sbr.rel (%p2312) target = $region80
        $region79: #{tpu_custom_call.1} parent=75 // pred_region
          %s2315 = sand.u32 %s209, 1
          %s2316 = scalar_lea.sflag [#allocation5], %s2315
          %s2317 = sand.u32 %s209, 1
          %s2318 = smul.addr %s2317, 256
          %s2319 = scalar_lea.vmem [#allocation11], %s2318
          %2320 = dma.done %s2316, 4096
        $region80: #{tpu_custom_call.1} parent=75 // pred_fallthru
          _
      $region76: #{tpu_custom_call.1} parent=5 // pred_fallthru
        _
    $region6: #{tpu_custom_call.1} parent=1 // loop_footer
      %s26 = sadd.s32 1, %s22
    $region7: #{tpu_custom_call.1} parent=1 // loop_footer_branch
      %21 = sbr.rel target = $region3
    $region8: #{tpu_custom_call.1} parent=1 // loop_exit
      _
    %2321 = vsyncpa [#allocation4], 1
    %s2322 = scalar_lea.sflag [#allocation4], 1
    %2323 = vsyncpa %s2322, 1
    %2324 = vsyncpa [#allocation7], 1
    %2325 = vsyncpa [#allocation10], 1
    %2326 = vsyncpa [#allocation5], 1
    %s2327 = scalar_lea.sflag [#allocation5], 1
    %2328 = vsyncpa %s2327, 1

</llo_original>
